<compile_context>
chip_gen: v7x
topology: tpu7x:2x2x1
jax: 0.10.0
libtpu: 0.0.40
codegen_flags: <defaults>
</compile_context>

<pallas_src>
import functools

import jax
import jax.numpy as jnp
from jax.experimental import pallas as pl
from jax.experimental.pallas import tpu as pltpu


# -----------------------------------------------------------------------------
# Fused kernel: LSTM recurrence (unrolled over S) + batched fc head.
# -----------------------------------------------------------------------------
def fused_lstm_mlp_kernel(x_ref, wih_ref, whh_ref, b_ref,
                          w1_ref, b1_ref, w2_ref, b2_ref, w3_ref, b3_ref,
                          o_ref, hs_sc, *, seq_len):
    SB, F = x_ref.shape
    S = seq_len
    B = SB // S
    H = whh_ref.shape[0]
    OW = w3_ref.shape[1]

    # ---- hoisted input projection: ONE MXU pass covering every timestep -----
    # x is time-major: row t*B + b is x[b, t], so per-step slices below are
    # contiguous static-offset blocks (no strided gather on the serial chain).
    xw = (jnp.dot(x_ref[...], wih_ref[...],
                  preferred_element_type=jnp.float32)
          + b_ref[...])                                   # (S*B, 4H), bias folded

    w_hh = whh_ref[...]

    # Hoisted lane constants for the single-tanh gate activation.
    # PyTorch gate order along 4H: [i, f, g, o]; g uses tanh, the rest sigmoid,
    # and sigmoid(x) = 0.5 * tanh(0.5 * x) + 0.5.
    lane = jax.lax.broadcasted_iota(jnp.int32, (B, 4 * H), 1)
    is_g = (lane >= 2 * H) & (lane < 3 * H)
    scale = jnp.where(is_g, 1.0, 0.5).astype(jnp.float32)   # pre & post multiplier
    shift = jnp.where(is_g, 0.0, 0.5).astype(jnp.float32)   # post offset

    h = jnp.zeros((B, H), jnp.float32)
    c = jnp.zeros((B, H), jnp.float32)

    # Static unroll: S is small; the scheduler sees the whole chain and can
    # overlap each step's MXU push with the elementwise tail of the previous.
    for t in range(S):
        gates = xw[t * B:(t + 1) * B, :] + jnp.dot(
            h, w_hh, preferred_element_type=jnp.float32)      # (B, 4H)
        tg = jnp.tanh(gates * scale)        # ONE EUP pass for all four gates
        act = tg * scale + shift            # sigmoid for i/f/o, tanh for g
        i = act[:, 0 * H:1 * H]
        f = act[:, 1 * H:2 * H]
        g = act[:, 2 * H:3 * H]
        o = act[:, 3 * H:4 * H]
        c = f * c + i * g
        h = o * jnp.tanh(c)
        j = t - (S - OW)
        if j >= 0:
            # Off-critical-path staging store into a single padded VMEM tile,
            # time-major rows (j*B + b).
            hs_sc[pl.ds(j * B, B), :] = h

    # ---- fused, fully batched fc head (Dropout = identity at inference) -----
    # One dense reload, 3 MXU pushes total, one dense output store.
    hsv = hs_sc[...]                                          # (OW*B, H)
    h1 = jnp.maximum(
        jnp.dot(hsv, w1_ref[...], preferred_element_type=jnp.float32)
        + b1_ref[...], 0.0)
    h2 = jnp.maximum(
        jnp.dot(h1, w2_ref[...], preferred_element_type=jnp.float32)
        + b2_ref[...], 0.0)
    o_ref[...] = (jnp.dot(h2, w3_ref[...], preferred_element_type=jnp.float32)
                  + b3_ref[...])                              # (OW*B, OW)


# -----------------------------------------------------------------------------
# Full module forward (single pallas_call; only trivial layout plumbing outside).
# -----------------------------------------------------------------------------
@functools.partial(jax.jit, static_argnames=("output_window",))
def ltsf_lstm_forward(x, params, *, output_window):
    """x: (B, S, F) batch-first.  Returns (B, output_window, output_window)."""
    B, S, F = x.shape
    if S < output_window:
        raise ValueError("sequence length must be >= output_window")
    H = params["w_hh"].shape[0]
    OW = output_window

    # Time-major flatten: row t*B + b = x[b, t] (layout plumbing, tiny).
    x_tm = jnp.transpose(x, (1, 0, 2)).reshape(S * B, F)

    raw = pl.pallas_call(
        functools.partial(fused_lstm_mlp_kernel, seq_len=S),
        out_shape=jax.ShapeDtypeStruct((OW * B, OW), jnp.float32),
        scratch_shapes=[pltpu.VMEM((OW * B, H), jnp.float32)],
    )(x_tm,
      params["w_ih"], params["w_hh"], params["b_lstm"],
      params["w1"], params["b1"],
      params["w2"], params["b2"],
      params["w3"], params["b3"])

    # raw row j*B + b holds the prediction for (batch b, horizon step j).
    return jnp.transpose(raw.reshape(OW, B, OW), (1, 0, 2))


# -----------------------------------------------------------------------------
# Pure-JAX reference (for correctness check)
# -----------------------------------------------------------------------------
def reference_forward(x, params, output_window):
    B, S, F = x.shape
    H = params["w_hh"].shape[0]

    def step(carry, x_t):
        h, c = carry
        gates = x_t @ params["w_ih"] + h @ params["w_hh"] + params["b_lstm"][0]
        i = jax.nn.sigmoid(gates[:, 0 * H:1 * H])
        f = jax.nn.sigmoid(gates[:, 1 * H:2 * H])
        g = jnp.tanh(gates[:, 2 * H:3 * H])
        o = jax.nn.sigmoid(gates[:, 3 * H:4 * H])
        c = f * c + i * g
        h = o * jnp.tanh(c)
        return (h, c), h

    h0 = jnp.zeros((B, H), jnp.float32)
    c0 = jnp.zeros((B, H), jnp.float32)
    _, hs = jax.lax.scan(step, (h0, c0), jnp.transpose(x, (1, 0, 2)))
    out = jnp.transpose(hs, (1, 0, 2))[:, -output_window:, :]
    h1 = jnp.maximum(out @ params["w1"] + params["b1"][0], 0.0)
    h2 = jnp.maximum(h1 @ params["w2"] + params["b2"][0], 0.0)
    return h2 @ params["w3"] + params["b3"][0]


# -----------------------------------------------------------------------------
# Deterministic parameter init (PyTorch-style uniform(-1/sqrt(fan_in), ...))
# -----------------------------------------------------------------------------
def init_params(key, feature_size, hidden_size, output_window):
    H, F = hidden_size, feature_size
    k = 1.0 / jnp.sqrt(jnp.float32(H))
    keys = jax.random.split(key, 12)
    u = lambda kk, shape, bound: jax.random.uniform(kk, shape, jnp.float32, -bound, bound)
    params = {
        # LSTM weights stored pre-transposed for the x @ W form; gate order [i,f,g,o]
        "w_ih": u(keys[0], (F, 4 * H), k),
        "w_hh": u(keys[1], (H, 4 * H), k),
        "b_lstm": u(keys[2], (1, 4 * H), k) + u(keys[3], (1, 4 * H), k),  # b_ih + b_hh
        # fc head
        "w1": u(keys[4], (H, H // 2), 1.0 / jnp.sqrt(jnp.float32(H))),
        "b1": u(keys[5], (1, H // 2), 1.0 / jnp.sqrt(jnp.float32(H))),
        "w2": u(keys[6], (H // 2, H // 4), 1.0 / jnp.sqrt(jnp.float32(H // 2))),
        "b2": u(keys[7], (1, H // 4), 1.0 / jnp.sqrt(jnp.float32(H // 2))),
        "w3": u(keys[8], (H // 4, output_window), 1.0 / jnp.sqrt(jnp.float32(H // 4))),
        "b3": u(keys[9], (1, output_window), 1.0 / jnp.sqrt(jnp.float32(H // 4))),
    }
    # TODO(synk): bidirectional_f branch is unused (bidirectional=False); not implemented.
    return params


if __name__ == "__main__":
    B, S, F = 2, 8, 4          # batch, seq len, feature_size
    H = 32                     # hidden_size
    OW = 4                     # output_window

    key = jax.random.PRNGKey(0)
    kx, kp = jax.random.split(key)
    x = jax.random.normal(kx, (B, S, F), jnp.float32)
    params = init_params(kp, F, H, OW)

    y = ltsf_lstm_forward(x, params, output_window=OW)
    y = jax.block_until_ready(y)

    y_ref = reference_forward(x, params, OW)
    assert y.shape == (B, OW, OW), y.shape
    # sigmoid-via-tanh identity introduces ~1e-7-level rounding drift vs
    # jax.nn.sigmoid; tolerance kept tight but with headroom for it.
    assert jnp.allclose(y, y_ref, atol=2e-5, rtol=2e-5), float(jnp.max(jnp.abs(y - y_ref)))

    print("KERNEL_OK")
</pallas_src>

<mosaic_0001>
module attributes {stable_mosaic.version = 11 : i64} {
  func.func @fused_lstm_mlp_kernel(%arg0: memref<16x4xf32, #tpu.memory_space<vmem>>, %arg1: memref<4x128xf32, #tpu.memory_space<vmem>>, %arg2: memref<32x128xf32, #tpu.memory_space<vmem>>, %arg3: memref<1x128xf32, #tpu.memory_space<vmem>>, %arg4: memref<32x16xf32, #tpu.memory_space<vmem>>, %arg5: memref<1x16xf32, #tpu.memory_space<vmem>>, %arg6: memref<16x8xf32, #tpu.memory_space<vmem>>, %arg7: memref<1x8xf32, #tpu.memory_space<vmem>>, %arg8: memref<8x4xf32, #tpu.memory_space<vmem>>, %arg9: memref<1x4xf32, #tpu.memory_space<vmem>>, %arg10: memref<8x4xf32, #tpu.memory_space<vmem>>, %arg11: memref<8x32xf32, #tpu.memory_space<vmem>>) attributes {dimension_semantics = [], scalar_prefetch = 0 : i64, scratch_operands = 1 : i64, tpu.core_type = #tpu.core_type<tc>} {
    %c0 = arith.constant 0 : index
    %c0_0 = arith.constant 0 : index
    %0 = vector.load %arg0[%c0, %c0_0] : memref<16x4xf32, #tpu.memory_space<vmem>>, vector<16x4xf32>
    %c0_1 = arith.constant 0 : index
    %c0_2 = arith.constant 0 : index
    %1 = vector.load %arg1[%c0_1, %c0_2] : memref<4x128xf32, #tpu.memory_space<vmem>>, vector<4x128xf32>
    %cst = arith.constant dense<0.000000e+00> : vector<16x128xf32>
    %2 = tpu.matmul %0, %1, %cst {dimension_numbers = #tpu.dot_dimension_numbers<[1], [0], [0], [1], [0, 0, 1, 1], [], []>} : vector<16x4xf32>, vector<4x128xf32>, vector<16x128xf32> -> vector<16x128xf32>
    %c0_3 = arith.constant 0 : index
    %c0_4 = arith.constant 0 : index
    %3 = vector.load %arg3[%c0_3, %c0_4] : memref<1x128xf32, #tpu.memory_space<vmem>>, vector<1x128xf32>
    %4 = vector.broadcast %3 : vector<1x128xf32> to vector<16x128xf32>
    %5 = arith.addf %2, %4 : vector<16x128xf32>
    %c0_5 = arith.constant 0 : index
    %c0_6 = arith.constant 0 : index
    %6 = vector.load %arg2[%c0_5, %c0_6] : memref<32x128xf32, #tpu.memory_space<vmem>>, vector<32x128xf32>
    %7 = tpu.iota {dimensions = array<i32: 1>} : vector<2x128xi32>
    %c64_i32 = arith.constant 64 : i32
    %8 = vector.broadcast %c64_i32 : i32 to vector<2x128xi32>
    %9 = arith.cmpi sge, %7, %8 : vector<2x128xi32>
    %c96_i32 = arith.constant 96 : i32
    %10 = vector.broadcast %c96_i32 : i32 to vector<2x128xi32>
    %11 = arith.cmpi slt, %7, %10 : vector<2x128xi32>
    %12 = arith.andi %9, %11 : vector<2x128xi1>
    %cst_7 = arith.constant 1.000000e+00 : f32
    %cst_8 = arith.constant 5.000000e-01 : f32
    %13 = vector.broadcast %cst_7 : f32 to vector<2x128xf32>
    %14 = vector.broadcast %cst_8 : f32 to vector<2x128xf32>
    %15 = arith.select %12, %13, %14 : vector<2x128xi1>, vector<2x128xf32>
    %cst_9 = arith.constant 0.000000e+00 : f32
    %cst_10 = arith.constant 5.000000e-01 : f32
    %16 = vector.broadcast %cst_9 : f32 to vector<2x128xf32>
    %17 = vector.broadcast %cst_10 : f32 to vector<2x128xf32>
    %18 = arith.select %12, %16, %17 : vector<2x128xi1>, vector<2x128xf32>
    %cst_11 = arith.constant 0.000000e+00 : f32
    %19 = vector.broadcast %cst_11 : f32 to vector<2x32xf32>
    %cst_12 = arith.constant 0.000000e+00 : f32
    %20 = vector.broadcast %cst_12 : f32 to vector<2x32xf32>
    %21 = vector.extract_strided_slice %5 {offsets = [0, 0], sizes = [2, 128], strides = [1, 1]} : vector<16x128xf32> to vector<2x128xf32>
    %cst_13 = arith.constant dense<0.000000e+00> : vector<2x128xf32>
    %22 = tpu.matmul %19, %6, %cst_13 {dimension_numbers = #tpu.dot_dimension_numbers<[1], [0], [0], [1], [0, 0, 1, 1], [], []>} : vector<2x32xf32>, vector<32x128xf32>, vector<2x128xf32> -> vector<2x128xf32>
    %23 = arith.addf %21, %22 : vector<2x128xf32>
    %24 = arith.mulf %23, %15 : vector<2x128xf32>
    %25 = math.tanh %24 : vector<2x128xf32>
    %26 = arith.mulf %25, %15 : vector<2x128xf32>
    %27 = arith.addf %26, %18 : vector<2x128xf32>
    %28 = vector.extract_strided_slice %27 {offsets = [0, 0], sizes = [2, 32], strides = [1, 1]} : vector<2x128xf32> to vector<2x32xf32>
    %29 = vector.extract_strided_slice %27 {offsets = [0, 32], sizes = [2, 32], strides = [1, 1]} : vector<2x128xf32> to vector<2x32xf32>
    %30 = vector.extract_strided_slice %27 {offsets = [0, 64], sizes = [2, 32], strides = [1, 1]} : vector<2x128xf32> to vector<2x32xf32>
    %31 = vector.extract_strided_slice %27 {offsets = [0, 96], sizes = [2, 32], strides = [1, 1]} : vector<2x128xf32> to vector<2x32xf32>
    %32 = arith.mulf %29, %20 : vector<2x32xf32>
    %33 = arith.mulf %28, %30 : vector<2x32xf32>
    %34 = arith.addf %32, %33 : vector<2x32xf32>
    %35 = math.tanh %34 : vector<2x32xf32>
    %36 = arith.mulf %31, %35 : vector<2x32xf32>
    %37 = vector.extract_strided_slice %5 {offsets = [2, 0], sizes = [2, 128], strides = [1, 1]} : vector<16x128xf32> to vector<2x128xf32>
    %cst_14 = arith.constant dense<0.000000e+00> : vector<2x128xf32>
    %38 = tpu.matmul %36, %6, %cst_14 {dimension_numbers = #tpu.dot_dimension_numbers<[1], [0], [0], [1], [0, 0, 1, 1], [], []>} : vector<2x32xf32>, vector<32x128xf32>, vector<2x128xf32> -> vector<2x128xf32>
    %39 = arith.addf %37, %38 : vector<2x128xf32>
    %40 = arith.mulf %39, %15 : vector<2x128xf32>
    %41 = math.tanh %40 : vector<2x128xf32>
    %42 = arith.mulf %41, %15 : vector<2x128xf32>
    %43 = arith.addf %42, %18 : vector<2x128xf32>
    %44 = vector.extract_strided_slice %43 {offsets = [0, 0], sizes = [2, 32], strides = [1, 1]} : vector<2x128xf32> to vector<2x32xf32>
    %45 = vector.extract_strided_slice %43 {offsets = [0, 32], sizes = [2, 32], strides = [1, 1]} : vector<2x128xf32> to vector<2x32xf32>
    %46 = vector.extract_strided_slice %43 {offsets = [0, 64], sizes = [2, 32], strides = [1, 1]} : vector<2x128xf32> to vector<2x32xf32>
    %47 = vector.extract_strided_slice %43 {offsets = [0, 96], sizes = [2, 32], strides = [1, 1]} : vector<2x128xf32> to vector<2x32xf32>
    %48 = arith.mulf %45, %34 : vector<2x32xf32>
    %49 = arith.mulf %44, %46 : vector<2x32xf32>
    %50 = arith.addf %48, %49 : vector<2x32xf32>
    %51 = math.tanh %50 : vector<2x32xf32>
    %52 = arith.mulf %47, %51 : vector<2x32xf32>
    %53 = vector.extract_strided_slice %5 {offsets = [4, 0], sizes = [2, 128], strides = [1, 1]} : vector<16x128xf32> to vector<2x128xf32>
    %cst_15 = arith.constant dense<0.000000e+00> : vector<2x128xf32>
    %54 = tpu.matmul %52, %6, %cst_15 {dimension_numbers = #tpu.dot_dimension_numbers<[1], [0], [0], [1], [0, 0, 1, 1], [], []>} : vector<2x32xf32>, vector<32x128xf32>, vector<2x128xf32> -> vector<2x128xf32>
    %55 = arith.addf %53, %54 : vector<2x128xf32>
    %56 = arith.mulf %55, %15 : vector<2x128xf32>
    %57 = math.tanh %56 : vector<2x128xf32>
    %58 = arith.mulf %57, %15 : vector<2x128xf32>
    %59 = arith.addf %58, %18 : vector<2x128xf32>
    %60 = vector.extract_strided_slice %59 {offsets = [0, 0], sizes = [2, 32], strides = [1, 1]} : vector<2x128xf32> to vector<2x32xf32>
    %61 = vector.extract_strided_slice %59 {offsets = [0, 32], sizes = [2, 32], strides = [1, 1]} : vector<2x128xf32> to vector<2x32xf32>
    %62 = vector.extract_strided_slice %59 {offsets = [0, 64], sizes = [2, 32], strides = [1, 1]} : vector<2x128xf32> to vector<2x32xf32>
    %63 = vector.extract_strided_slice %59 {offsets = [0, 96], sizes = [2, 32], strides = [1, 1]} : vector<2x128xf32> to vector<2x32xf32>
    %64 = arith.mulf %61, %50 : vector<2x32xf32>
    %65 = arith.mulf %60, %62 : vector<2x32xf32>
    %66 = arith.addf %64, %65 : vector<2x32xf32>
    %67 = math.tanh %66 : vector<2x32xf32>
    %68 = arith.mulf %63, %67 : vector<2x32xf32>
    %69 = vector.extract_strided_slice %5 {offsets = [6, 0], sizes = [2, 128], strides = [1, 1]} : vector<16x128xf32> to vector<2x128xf32>
    %cst_16 = arith.constant dense<0.000000e+00> : vector<2x128xf32>
    %70 = tpu.matmul %68, %6, %cst_16 {dimension_numbers = #tpu.dot_dimension_numbers<[1], [0], [0], [1], [0, 0, 1, 1], [], []>} : vector<2x32xf32>, vector<32x128xf32>, vector<2x128xf32> -> vector<2x128xf32>
    %71 = arith.addf %69, %70 : vector<2x128xf32>
    %72 = arith.mulf %71, %15 : vector<2x128xf32>
    %73 = math.tanh %72 : vector<2x128xf32>
    %74 = arith.mulf %73, %15 : vector<2x128xf32>
    %75 = arith.addf %74, %18 : vector<2x128xf32>
    %76 = vector.extract_strided_slice %75 {offsets = [0, 0], sizes = [2, 32], strides = [1, 1]} : vector<2x128xf32> to vector<2x32xf32>
    %77 = vector.extract_strided_slice %75 {offsets = [0, 32], sizes = [2, 32], strides = [1, 1]} : vector<2x128xf32> to vector<2x32xf32>
    %78 = vector.extract_strided_slice %75 {offsets = [0, 64], sizes = [2, 32], strides = [1, 1]} : vector<2x128xf32> to vector<2x32xf32>
    %79 = vector.extract_strided_slice %75 {offsets = [0, 96], sizes = [2, 32], strides = [1, 1]} : vector<2x128xf32> to vector<2x32xf32>
    %80 = arith.mulf %77, %66 : vector<2x32xf32>
    %81 = arith.mulf %76, %78 : vector<2x32xf32>
    %82 = arith.addf %80, %81 : vector<2x32xf32>
    %83 = math.tanh %82 : vector<2x32xf32>
    %84 = arith.mulf %79, %83 : vector<2x32xf32>
    %85 = vector.extract_strided_slice %5 {offsets = [8, 0], sizes = [2, 128], strides = [1, 1]} : vector<16x128xf32> to vector<2x128xf32>
    %cst_17 = arith.constant dense<0.000000e+00> : vector<2x128xf32>
    %86 = tpu.matmul %84, %6, %cst_17 {dimension_numbers = #tpu.dot_dimension_numbers<[1], [0], [0], [1], [0, 0, 1, 1], [], []>} : vector<2x32xf32>, vector<32x128xf32>, vector<2x128xf32> -> vector<2x128xf32>
    %87 = arith.addf %85, %86 : vector<2x128xf32>
    %88 = arith.mulf %87, %15 : vector<2x128xf32>
    %89 = math.tanh %88 : vector<2x128xf32>
    %90 = arith.mulf %89, %15 : vector<2x128xf32>
    %91 = arith.addf %90, %18 : vector<2x128xf32>
    %92 = vector.extract_strided_slice %91 {offsets = [0, 0], sizes = [2, 32], strides = [1, 1]} : vector<2x128xf32> to vector<2x32xf32>
    %93 = vector.extract_strided_slice %91 {offsets = [0, 32], sizes = [2, 32], strides = [1, 1]} : vector<2x128xf32> to vector<2x32xf32>
    %94 = vector.extract_strided_slice %91 {offsets = [0, 64], sizes = [2, 32], strides = [1, 1]} : vector<2x128xf32> to vector<2x32xf32>
    %95 = vector.extract_strided_slice %91 {offsets = [0, 96], sizes = [2, 32], strides = [1, 1]} : vector<2x128xf32> to vector<2x32xf32>
    %96 = arith.mulf %93, %82 : vector<2x32xf32>
    %97 = arith.mulf %92, %94 : vector<2x32xf32>
    %98 = arith.addf %96, %97 : vector<2x32xf32>
    %99 = math.tanh %98 : vector<2x32xf32>
    %100 = arith.mulf %95, %99 : vector<2x32xf32>
    %c0_18 = arith.constant 0 : index
    %c0_19 = arith.constant 0 : index
    %101 = vector.load %arg11[%c0_18, %c0_19] : memref<8x32xf32, #tpu.memory_space<vmem>>, vector<2x32xf32>
    tpu.vector_store %arg11[%c0_18, %c0_19], %100 {strides = array<i32>} : memref<8x32xf32, #tpu.memory_space<vmem>>, vector<2x32xf32>,
    %102 = vector.extract_strided_slice %5 {offsets = [10, 0], sizes = [2, 128], strides = [1, 1]} : vector<16x128xf32> to vector<2x128xf32>
    %cst_20 = arith.constant dense<0.000000e+00> : vector<2x128xf32>
    %103 = tpu.matmul %100, %6, %cst_20 {dimension_numbers = #tpu.dot_dimension_numbers<[1], [0], [0], [1], [0, 0, 1, 1], [], []>} : vector<2x32xf32>, vector<32x128xf32>, vector<2x128xf32> -> vector<2x128xf32>
    %104 = arith.addf %102, %103 : vector<2x128xf32>
    %105 = arith.mulf %104, %15 : vector<2x128xf32>
    %106 = math.tanh %105 : vector<2x128xf32>
    %107 = arith.mulf %106, %15 : vector<2x128xf32>
    %108 = arith.addf %107, %18 : vector<2x128xf32>
    %109 = vector.extract_strided_slice %108 {offsets = [0, 0], sizes = [2, 32], strides = [1, 1]} : vector<2x128xf32> to vector<2x32xf32>
    %110 = vector.extract_strided_slice %108 {offsets = [0, 32], sizes = [2, 32], strides = [1, 1]} : vector<2x128xf32> to vector<2x32xf32>
    %111 = vector.extract_strided_slice %108 {offsets = [0, 64], sizes = [2, 32], strides = [1, 1]} : vector<2x128xf32> to vector<2x32xf32>
    %112 = vector.extract_strided_slice %108 {offsets = [0, 96], sizes = [2, 32], strides = [1, 1]} : vector<2x128xf32> to vector<2x32xf32>
    %113 = arith.mulf %110, %98 : vector<2x32xf32>
    %114 = arith.mulf %109, %111 : vector<2x32xf32>
    %115 = arith.addf %113, %114 : vector<2x32xf32>
    %116 = math.tanh %115 : vector<2x32xf32>
    %117 = arith.mulf %112, %116 : vector<2x32xf32>
    %c2 = arith.constant 2 : index
    %c0_21 = arith.constant 0 : index
    %118 = vector.load %arg11[%c2, %c0_21] : memref<8x32xf32, #tpu.memory_space<vmem>>, vector<2x32xf32>
    tpu.vector_store %arg11[%c2, %c0_21], %117 {strides = array<i32>} : memref<8x32xf32, #tpu.memory_space<vmem>>, vector<2x32xf32>,
    %119 = vector.extract_strided_slice %5 {offsets = [12, 0], sizes = [2, 128], strides = [1, 1]} : vector<16x128xf32> to vector<2x128xf32>
    %cst_22 = arith.constant dense<0.000000e+00> : vector<2x128xf32>
    %120 = tpu.matmul %117, %6, %cst_22 {dimension_numbers = #tpu.dot_dimension_numbers<[1], [0], [0], [1], [0, 0, 1, 1], [], []>} : vector<2x32xf32>, vector<32x128xf32>, vector<2x128xf32> -> vector<2x128xf32>
    %121 = arith.addf %119, %120 : vector<2x128xf32>
    %122 = arith.mulf %121, %15 : vector<2x128xf32>
    %123 = math.tanh %122 : vector<2x128xf32>
    %124 = arith.mulf %123, %15 : vector<2x128xf32>
    %125 = arith.addf %124, %18 : vector<2x128xf32>
    %126 = vector.extract_strided_slice %125 {offsets = [0, 0], sizes = [2, 32], strides = [1, 1]} : vector<2x128xf32> to vector<2x32xf32>
    %127 = vector.extract_strided_slice %125 {offsets = [0, 32], sizes = [2, 32], strides = [1, 1]} : vector<2x128xf32> to vector<2x32xf32>
    %128 = vector.extract_strided_slice %125 {offsets = [0, 64], sizes = [2, 32], strides = [1, 1]} : vector<2x128xf32> to vector<2x32xf32>
    %129 = vector.extract_strided_slice %125 {offsets = [0, 96], sizes = [2, 32], strides = [1, 1]} : vector<2x128xf32> to vector<2x32xf32>
    %130 = arith.mulf %127, %115 : vector<2x32xf32>
    %131 = arith.mulf %126, %128 : vector<2x32xf32>
    %132 = arith.addf %130, %131 : vector<2x32xf32>
    %133 = math.tanh %132 : vector<2x32xf32>
    %134 = arith.mulf %129, %133 : vector<2x32xf32>
    %c4 = arith.constant 4 : index
    %c0_23 = arith.constant 0 : index
    %135 = vector.load %arg11[%c4, %c0_23] : memref<8x32xf32, #tpu.memory_space<vmem>>, vector<2x32xf32>
    tpu.vector_store %arg11[%c4, %c0_23], %134 {strides = array<i32>} : memref<8x32xf32, #tpu.memory_space<vmem>>, vector<2x32xf32>,
    %136 = vector.extract_strided_slice %5 {offsets = [14, 0], sizes = [2, 128], strides = [1, 1]} : vector<16x128xf32> to vector<2x128xf32>
    %cst_24 = arith.constant dense<0.000000e+00> : vector<2x128xf32>
    %137 = tpu.matmul %134, %6, %cst_24 {dimension_numbers = #tpu.dot_dimension_numbers<[1], [0], [0], [1], [0, 0, 1, 1], [], []>} : vector<2x32xf32>, vector<32x128xf32>, vector<2x128xf32> -> vector<2x128xf32>
    %138 = arith.addf %136, %137 : vector<2x128xf32>
    %139 = arith.mulf %138, %15 : vector<2x128xf32>
    %140 = math.tanh %139 : vector<2x128xf32>
    %141 = arith.mulf %140, %15 : vector<2x128xf32>
    %142 = arith.addf %141, %18 : vector<2x128xf32>
    %143 = vector.extract_strided_slice %142 {offsets = [0, 0], sizes = [2, 32], strides = [1, 1]} : vector<2x128xf32> to vector<2x32xf32>
    %144 = vector.extract_strided_slice %142 {offsets = [0, 32], sizes = [2, 32], strides = [1, 1]} : vector<2x128xf32> to vector<2x32xf32>
    %145 = vector.extract_strided_slice %142 {offsets = [0, 64], sizes = [2, 32], strides = [1, 1]} : vector<2x128xf32> to vector<2x32xf32>
    %146 = vector.extract_strided_slice %142 {offsets = [0, 96], sizes = [2, 32], strides = [1, 1]} : vector<2x128xf32> to vector<2x32xf32>
    %147 = arith.mulf %144, %132 : vector<2x32xf32>
    %148 = arith.mulf %143, %145 : vector<2x32xf32>
    %149 = arith.addf %147, %148 : vector<2x32xf32>
    %150 = math.tanh %149 : vector<2x32xf32>
    %151 = arith.mulf %146, %150 : vector<2x32xf32>
    %c6 = arith.constant 6 : index
    %c0_25 = arith.constant 0 : index
    %152 = vector.load %arg11[%c6, %c0_25] : memref<8x32xf32, #tpu.memory_space<vmem>>, vector<2x32xf32>
    tpu.vector_store %arg11[%c6, %c0_25], %151 {strides = array<i32>} : memref<8x32xf32, #tpu.memory_space<vmem>>, vector<2x32xf32>,
    %c0_26 = arith.constant 0 : index
    %c0_27 = arith.constant 0 : index
    %153 = vector.load %arg11[%c0_26, %c0_27] : memref<8x32xf32, #tpu.memory_space<vmem>>, vector<8x32xf32>
    %c0_28 = arith.constant 0 : index
    %c0_29 = arith.constant 0 : index
    %154 = vector.load %arg4[%c0_28, %c0_29] : memref<32x16xf32, #tpu.memory_space<vmem>>, vector<32x16xf32>
    %cst_30 = arith.constant dense<0.000000e+00> : vector<8x16xf32>
    %155 = tpu.matmul %153, %154, %cst_30 {dimension_numbers = #tpu.dot_dimension_numbers<[1], [0], [0], [1], [0, 0, 1, 1], [], []>} : vector<8x32xf32>, vector<32x16xf32>, vector<8x16xf32> -> vector<8x16xf32>
    %c0_31 = arith.constant 0 : index
    %c0_32 = arith.constant 0 : index
    %156 = vector.load %arg5[%c0_31, %c0_32] : memref<1x16xf32, #tpu.memory_space<vmem>>, vector<1x16xf32>
    %157 = vector.broadcast %156 : vector<1x16xf32> to vector<8x16xf32>
    %158 = arith.addf %155, %157 : vector<8x16xf32>
    %cst_33 = arith.constant 0.000000e+00 : f32
    %159 = vector.broadcast %cst_33 : f32 to vector<8x16xf32>
    %160 = arith.maximumf %158, %159 : vector<8x16xf32>
    %c0_34 = arith.constant 0 : index
    %c0_35 = arith.constant 0 : index
    %161 = vector.load %arg6[%c0_34, %c0_35] : memref<16x8xf32, #tpu.memory_space<vmem>>, vector<16x8xf32>
    %cst_36 = arith.constant dense<0.000000e+00> : vector<8x8xf32>
    %162 = tpu.matmul %160, %161, %cst_36 {dimension_numbers = #tpu.dot_dimension_numbers<[1], [0], [0], [1], [0, 0, 1, 1], [], []>} : vector<8x16xf32>, vector<16x8xf32>, vector<8x8xf32> -> vector<8x8xf32>
    %c0_37 = arith.constant 0 : index
    %c0_38 = arith.constant 0 : index
    %163 = vector.load %arg7[%c0_37, %c0_38] : memref<1x8xf32, #tpu.memory_space<vmem>>, vector<1x8xf32>
    %164 = vector.broadcast %163 : vector<1x8xf32> to vector<8x8xf32>
    %165 = arith.addf %162, %164 : vector<8x8xf32>
    %cst_39 = arith.constant 0.000000e+00 : f32
    %166 = vector.broadcast %cst_39 : f32 to vector<8x8xf32>
    %167 = arith.maximumf %165, %166 : vector<8x8xf32>
    %c0_40 = arith.constant 0 : index
    %c0_41 = arith.constant 0 : index
    %168 = vector.load %arg8[%c0_40, %c0_41] : memref<8x4xf32, #tpu.memory_space<vmem>>, vector<8x4xf32>
    %cst_42 = arith.constant dense<0.000000e+00> : vector<8x4xf32>
    %169 = tpu.matmul %167, %168, %cst_42 {dimension_numbers = #tpu.dot_dimension_numbers<[1], [0], [0], [1], [0, 0, 1, 1], [], []>} : vector<8x8xf32>, vector<8x4xf32>, vector<8x4xf32> -> vector<8x4xf32>
    %c0_43 = arith.constant 0 : index
    %c0_44 = arith.constant 0 : index
    %170 = vector.load %arg9[%c0_43, %c0_44] : memref<1x4xf32, #tpu.memory_space<vmem>>, vector<1x4xf32>
    %171 = vector.broadcast %170 : vector<1x4xf32> to vector<8x4xf32>
    %172 = arith.addf %169, %171 : vector<8x4xf32>
    %c0_45 = arith.constant 0 : index
    %c0_46 = arith.constant 0 : index
    %173 = vector.load %arg10[%c0_45, %c0_46] : memref<8x4xf32, #tpu.memory_space<vmem>>, vector<8x4xf32>
    tpu.vector_store %arg10[%c0_45, %c0_46], %172 {strides = array<i32>} : memref<8x4xf32, #tpu.memory_space<vmem>>, vector<8x4xf32>,
    return
  }
}

</mosaic_0001>

<llo_original>
// kernel: ltsf_lstm_forward.1
$region0: #{ltsf_lstm_forward.1}
  #allocation0 [shape = 'u32[]', space=smem, size = 0x4, offset = 0x4, fixed_abs, tag = 'smem constant byte address 0x4 - core index']
  #allocation1 [shape = 'u32[144,128]{1,0:T(1,128)}', space=vmem, size = 0x12000, scoped, tag = 'internal scratch']
  #allocation2 [shape = 'f32[8,32]{1,0:T(8,128)}', space=vmem, size = 0x1000, scoped, tag = 'scratch operand']
  %s0 = inlined_call_operand.vmem [shape: f32[16,4], index: 0, kind: input, shape index: {}]
  %s1 = inlined_call_operand.vmem [shape: f32[4,128], index: 1, kind: input, shape index: {}]
  %s2 = inlined_call_operand.vmem [shape: f32[32,128], index: 2, kind: input, shape index: {}]
  %s3 = inlined_call_operand.vmem [shape: f32[1,128], index: 3, kind: input, shape index: {}]
  %s4 = inlined_call_operand.vmem [shape: f32[32,16], index: 4, kind: input, shape index: {}]
  %s5 = inlined_call_operand.vmem [shape: f32[1,16], index: 5, kind: input, shape index: {}]
  %s6 = inlined_call_operand.vmem [shape: f32[16,8], index: 6, kind: input, shape index: {}]
  %s7 = inlined_call_operand.vmem [shape: f32[1,8], index: 7, kind: input, shape index: {}]
  %s8 = inlined_call_operand.vmem [shape: f32[8,4], index: 8, kind: input, shape index: {}]
  %s9 = inlined_call_operand.vmem [shape: f32[1,4], index: 9, kind: input, shape index: {}]
  %s10 = inlined_call_operand.vmem [shape: f32[8,4], index: 10, kind: output, shape index: {}]
  %s11 = sld [smem:[#allocation0]]
  $region50: #{ltsf_lstm_forward.1} parent=0
    _
  %s13 = ssub.s32 1, %s11
  %s14 = scalar_select 0, %s13, %s11
  // Predicated region
  $region2: #{ltsf_lstm_forward.1} parent=0 // pred_check
    _
  $region3: #{ltsf_lstm_forward.1} parent=0 // pred_check_branch
    %16 = sbr.rel (0) target = $region5
  $region4: #{ltsf_lstm_forward.1} parent=0 // pred_region
    _
  $region5: #{ltsf_lstm_forward.1} parent=0 // pred_fallthru
    _
  // Predicated region
  $region6: #{ltsf_lstm_forward.1} parent=0 // pred_check
    _
  $region7: #{ltsf_lstm_forward.1} parent=0 // pred_check_branch
    %18 = sbr.rel (0) target = $region9
  $region8: #{ltsf_lstm_forward.1} parent=0 // pred_region
    _
  $region9: #{ltsf_lstm_forward.1} parent=0 // pred_fallthru
    _
  // Predicated region
  $region10: #{ltsf_lstm_forward.1} parent=0 // pred_check
    _
  $region11: #{ltsf_lstm_forward.1} parent=0 // pred_check_branch
    %20 = sbr.rel (0) target = $region13
  $region12: #{ltsf_lstm_forward.1} parent=0 // pred_region
    _
  $region13: #{ltsf_lstm_forward.1} parent=0 // pred_fallthru
    _
  // Predicated region
  $region14: #{ltsf_lstm_forward.1} parent=0 // pred_check
    _
  $region15: #{ltsf_lstm_forward.1} parent=0 // pred_check_branch
    %22 = sbr.rel (0) target = $region17
  $region16: #{ltsf_lstm_forward.1} parent=0 // pred_region
    _
  $region17: #{ltsf_lstm_forward.1} parent=0 // pred_fallthru
    _
  // Predicated region
  $region18: #{ltsf_lstm_forward.1} parent=0 // pred_check
    _
  $region19: #{ltsf_lstm_forward.1} parent=0 // pred_check_branch
    %24 = sbr.rel (0) target = $region21
  $region20: #{ltsf_lstm_forward.1} parent=0 // pred_region
    _
  $region21: #{ltsf_lstm_forward.1} parent=0 // pred_fallthru
    _
  // Predicated region
  $region22: #{ltsf_lstm_forward.1} parent=0 // pred_check
    _
  $region23: #{ltsf_lstm_forward.1} parent=0 // pred_check_branch
    %26 = sbr.rel (0) target = $region25
  $region24: #{ltsf_lstm_forward.1} parent=0 // pred_region
    _
  $region25: #{ltsf_lstm_forward.1} parent=0 // pred_fallthru
    _
  // Predicated region
  $region26: #{ltsf_lstm_forward.1} parent=0 // pred_check
    _
  $region27: #{ltsf_lstm_forward.1} parent=0 // pred_check_branch
    %28 = sbr.rel (0) target = $region29
  $region28: #{ltsf_lstm_forward.1} parent=0 // pred_region
    _
  $region29: #{ltsf_lstm_forward.1} parent=0 // pred_fallthru
    _
  // Predicated region
  $region30: #{ltsf_lstm_forward.1} parent=0 // pred_check
    _
  $region31: #{ltsf_lstm_forward.1} parent=0 // pred_check_branch
    %30 = sbr.rel (0) target = $region33
  $region32: #{ltsf_lstm_forward.1} parent=0 // pred_region
    _
  $region33: #{ltsf_lstm_forward.1} parent=0 // pred_fallthru
    _
  // Predicated region
  $region34: #{ltsf_lstm_forward.1} parent=0 // pred_check
    _
  $region35: #{ltsf_lstm_forward.1} parent=0 // pred_check_branch
    %32 = sbr.rel (0) target = $region37
  $region36: #{ltsf_lstm_forward.1} parent=0 // pred_region
    _
  $region37: #{ltsf_lstm_forward.1} parent=0 // pred_fallthru
    _
  // Predicated region
  $region38: #{ltsf_lstm_forward.1} parent=0 // pred_check
    _
  $region39: #{ltsf_lstm_forward.1} parent=0 // pred_check_branch
    %34 = sbr.rel (0) target = $region41
  $region40: #{ltsf_lstm_forward.1} parent=0 // pred_region
    _
  $region41: #{ltsf_lstm_forward.1} parent=0 // pred_fallthru
    _
  %v35 = vld [vmem:[%s0] sm:$0xff]
  %v36 = vld [vmem:[%s0 + $0x8] sm:$0xff]
  %v37 = vld [vmem:[%s1] sm:$0xf]
  %v38 = vld [vmem:[%s3] sm:$0x1]
  %v40 = vlaneseq
  %v41 = vshrl.u32 %v40, 7
  %v42 = vsub.s32 0, %v41
  %v43 = vrot.slane %v38, %v42
  %vm45 = vcmask 31744
  %v47 = vsel %vm45, %v35, 0
  %v50 = vsel %vm45, %v36, 0
  %vm52 = vcmask 1043456
  %v54 = vsel %vm52, %v37, 0
  %56 = vmatprep.subr.mxu0 0.0
  %57 = vmatpush1.msra.mxu0 %v54
  %58 = vmatprep.subr.mxu0 0.0
  %59 = vmatpush1.msra.mxu0 0.0
  %60 = vmatprep.subr.mxu0 0.0
  %61 = vmatpush1.msra.mxu0 0.0
  %62 = vmatprep.subr.mxu0 0.0
  %63 = vmatpush1.msra.mxu0 0.0
  %64 = vmatprep.subr.mxu0 0.0
  %65 = vmatpush1.msra.mxu0 0.0
  %66 = vmatprep.subr.mxu0 0.0
  %67 = vmatpush1.msra.mxu0 0.0
  %68 = vmatprep.subr.mxu0 0.0
  %69 = vmatpush1.msra.mxu0 0.0
  %70 = vmatprep.subr.mxu0 0.0
  %71 = vmatpush1.msra.mxu0 0.0
  %72 = vmatprep.subr.mxu0 0.0
  %73 = vmatpush1.msra.mxu0 0.0
  %74 = vmatprep.subr.mxu0 0.0
  %75 = vmatpush1.msra.mxu0 0.0
  %76 = vmatprep.subr.mxu0 0.0
  %77 = vmatpush1.msra.mxu0 0.0
  %78 = vmatprep.subr.mxu0 0.0
  %79 = vmatpush1.msra.mxu0 0.0
  %80 = vmatprep.subr.mxu0 0.0
  %81 = vmatpush1.msra.mxu0 0.0
  %82 = vmatprep.subr.mxu0 0.0
  %83 = vmatpush1.msra.mxu0 0.0
  %84 = vmatprep.subr.mxu0 0.0
  %85 = vmatpush1.msra.mxu0 0.0
  %86 = vmatprep.subr.mxu0 0.0
  %87 = vmatpush1.msra.mxu0 0.0
  %88 = vmatprep.subr.mxu0 0.0
  %89 = vmatpush1.msra.mxu0 0.0
  %90 = vmatprep.subr.mxu0 0.0
  %91 = vmatpush1.msra.mxu0 0.0
  %92 = vmatprep.subr.mxu0 0.0
  %93 = vmatpush1.msra.mxu0 0.0
  %94 = vmatprep.subr.mxu0 0.0
  %95 = vmatpush1.msra.mxu0 0.0
  %96 = vmatprep.subr.mxu0 0.0
  %97 = vmatpush1.msra.mxu0 0.0
  %98 = vmatprep.subr.mxu0 0.0
  %99 = vmatpush1.msra.mxu0 0.0
  %100 = vmatprep.subr.mxu0 0.0
  %101 = vmatpush1.msra.mxu0 0.0
  %102 = vmatprep.subr.mxu0 0.0
  %103 = vmatpush1.msra.mxu0 0.0
  %104 = vmatprep.subr.mxu0 0.0
  %105 = vmatpush1.msra.mxu0 0.0
  %106 = vmatprep.subr.mxu0 0.0
  %107 = vmatpush1.msra.mxu0 0.0
  %108 = vmatprep.subr.mxu0 0.0
  %109 = vmatpush1.msra.mxu0 0.0
  %110 = vmatprep.subr.mxu0 0.0
  %111 = vmatpush1.msra.mxu0 0.0
  %112 = vmatprep.subr.mxu0 0.0
  %113 = vmatpush1.msra.mxu0 0.0
  %114 = vmatprep.subr.mxu0 0.0
  %115 = vmatpush1.msra.mxu0 0.0
  %116 = vmatprep.subr.mxu0 0.0
  %117 = vmatpush1.msra.mxu0 0.0
  %118 = vmatprep.subr.mxu0 0.0
  %119 = vmatpush1.msra.mxu0 0.0
  %120 = vmatprep.mubr.f32.mxu0 0.0
  %121 = vmatmul.mubr.f32.gmra.mrb[0].mxu0 %v47
  %v122 = vpop.f32.mrb[0].mxu0
  %v123 = vadd.f32 %v43, %v122
  %v124 = vpop.f32.mrb[0].mxu0
  %125 = vmatprep.mubr.f32.mxu0 0.0
  %126 = vmatmul.mubr.f32.gmra.mrb[0].mxu0 %v50
  %v127 = vpop.f32.mrb[0].mxu0
  %v128 = vadd.f32 %v43, %v127
  %v129 = vpop.f32.mrb[0].mxu0
  %130 = vdwg.mxu0
  %v131 = vld [vmem:[%s2] sm:$0xff]
  %v132 = vld [vmem:[%s2 + $0x8] sm:$0xff]
  %v133 = vld [vmem:[%s2 + $0x10] sm:$0xff]
  %v134 = vld [vmem:[%s2 + $0x18] sm:$0xff]
  %v135 = vlaneseq
  %v136 = vand.u32 %v135, 127
  %vm137 = vcmp.ge.s32.totalorder %v136, 64
  %vm138 = vcmp.lt.s32.totalorder %v136, 96
  %vm139 = vmand %vm137, %vm138
  %v140 = vsel %vm139, 1.0, 0.5
  %v141 = vsel %vm139, 0.0, 0.5
  %vm142 = vcmask 261120
  %v144 = vsel %vm142, 0.0, 0
  %146 = vmatprep.subr.mxu0 0.0
  %147 = vmatpush1.msra.mxu0 %v131
  %148 = vmatprep.subr.mxu0 0.0
  %149 = vmatpush1.msra.mxu0 %v132
  %150 = vmatprep.subr.mxu0 0.0
  %151 = vmatpush1.msra.mxu0 %v133
  %152 = vmatprep.subr.mxu0 0.0
  %153 = vmatpush1.msra.mxu0 %v134
  %154 = vmatprep.subr.mxu0 0.0
  %155 = vmatpush1.msra.mxu0 0.0
  %156 = vmatprep.subr.mxu0 0.0
  %157 = vmatpush1.msra.mxu0 0.0
  %158 = vmatprep.subr.mxu0 0.0
  %159 = vmatpush1.msra.mxu0 0.0
  %160 = vmatprep.subr.mxu0 0.0
  %161 = vmatpush1.msra.mxu0 0.0
  %162 = vmatprep.subr.mxu0 0.0
  %163 = vmatpush1.msra.mxu0 0.0
  %164 = vmatprep.subr.mxu0 0.0
  %165 = vmatpush1.msra.mxu0 0.0
  %166 = vmatprep.subr.mxu0 0.0
  %167 = vmatpush1.msra.mxu0 0.0
  %168 = vmatprep.subr.mxu0 0.0
  %169 = vmatpush1.msra.mxu0 0.0
  %170 = vmatprep.subr.mxu0 0.0
  %171 = vmatpush1.msra.mxu0 0.0
  %172 = vmatprep.subr.mxu0 0.0
  %173 = vmatpush1.msra.mxu0 0.0
  %174 = vmatprep.subr.mxu0 0.0
  %175 = vmatpush1.msra.mxu0 0.0
  %176 = vmatprep.subr.mxu0 0.0
  %177 = vmatpush1.msra.mxu0 0.0
  %178 = vmatprep.subr.mxu0 0.0
  %179 = vmatpush1.msra.mxu0 0.0
  %180 = vmatprep.subr.mxu0 0.0
  %181 = vmatpush1.msra.mxu0 0.0
  %182 = vmatprep.subr.mxu0 0.0
  %183 = vmatpush1.msra.mxu0 0.0
  %184 = vmatprep.subr.mxu0 0.0
  %185 = vmatpush1.msra.mxu0 0.0
  %186 = vmatprep.subr.mxu0 0.0
  %187 = vmatpush1.msra.mxu0 0.0
  %188 = vmatprep.subr.mxu0 0.0
  %189 = vmatpush1.msra.mxu0 0.0
  %190 = vmatprep.subr.mxu0 0.0
  %191 = vmatpush1.msra.mxu0 0.0
  %192 = vmatprep.subr.mxu0 0.0
  %193 = vmatpush1.msra.mxu0 0.0
  %194 = vmatprep.subr.mxu0 0.0
  %195 = vmatpush1.msra.mxu0 0.0
  %196 = vmatprep.subr.mxu0 0.0
  %197 = vmatpush1.msra.mxu0 0.0
  %198 = vmatprep.subr.mxu0 0.0
  %199 = vmatpush1.msra.mxu0 0.0
  %200 = vmatprep.subr.mxu0 0.0
  %201 = vmatpush1.msra.mxu0 0.0
  %202 = vmatprep.subr.mxu0 0.0
  %203 = vmatpush1.msra.mxu0 0.0
  %204 = vmatprep.subr.mxu0 0.0
  %205 = vmatpush1.msra.mxu0 0.0
  %206 = vmatprep.subr.mxu0 0.0
  %207 = vmatpush1.msra.mxu0 0.0
  %208 = vmatprep.subr.mxu0 0.0
  %209 = vmatpush1.msra.mxu0 0.0
  %210 = vmatprep.mubr.f32.mxu0 0.0
  %211 = vmatmul.mubr.f32.gmra.mrb[0].mxu0 %v144
  %v212 = vpop.f32.mrb[0].mxu0
  %v213 = vadd.f32 0.0, %v212
  %v214 = vpop.f32.mrb[0].mxu0
  %215 = vdwg.mxu0
  %v216 = vadd.f32 %v123, %v213
  %v217 = vmul.f32 %v216, %v140
  %v218 = vtanh.pop %v217
  %v219 = vmul.f32 %v218, %v140
  %v220 = vadd.f32 %v219, %v141
  %v221 = vmul.f32 %v220, 0.0
  %223 = vrot.lane.b32.xlu0 %v220, 64
  %v224 = vpop.permute.xlu0 %223
  %v226 = vmul.f32 %v220, %v224
  %228 = vrot.lane.b32.xlu0 %v226, 32
  %v229 = vpop.permute.xlu0 %228
  %v231 = vadd.f32 %v221, %v229
  %v232 = vtanh.pop %v231
  %234 = vrot.lane.b32.xlu0 %v232, 64
  %v235 = vpop.permute.xlu0 %234
  %v237 = vmul.f32 %v220, %v235
  %239 = vrot.lane.b32.xlu0 %v237, 32
  %v240 = vpop.permute.xlu0 %239
  %v241 = vsel %vm142, %v240, 0
  %243 = vmatprep.subr.mxu0 0.0
  %244 = vmatpush1.msra.mxu0 %v131
  %245 = vmatprep.subr.mxu0 0.0
  %246 = vmatpush1.msra.mxu0 %v132
  %247 = vmatprep.subr.mxu0 0.0
  %248 = vmatpush1.msra.mxu0 %v133
  %249 = vmatprep.subr.mxu0 0.0
  %250 = vmatpush1.msra.mxu0 %v134
  %251 = vmatprep.subr.mxu0 0.0
  %252 = vmatpush1.msra.mxu0 0.0
  %253 = vmatprep.subr.mxu0 0.0
  %254 = vmatpush1.msra.mxu0 0.0
  %255 = vmatprep.subr.mxu0 0.0
  %256 = vmatpush1.msra.mxu0 0.0
  %257 = vmatprep.subr.mxu0 0.0
  %258 = vmatpush1.msra.mxu0 0.0
  %259 = vmatprep.subr.mxu0 0.0
  %260 = vmatpush1.msra.mxu0 0.0
  %261 = vmatprep.subr.mxu0 0.0
  %262 = vmatpush1.msra.mxu0 0.0
  %263 = vmatprep.subr.mxu0 0.0
  %264 = vmatpush1.msra.mxu0 0.0
  %265 = vmatprep.subr.mxu0 0.0
  %266 = vmatpush1.msra.mxu0 0.0
  %267 = vmatprep.subr.mxu0 0.0
  %268 = vmatpush1.msra.mxu0 0.0
  %269 = vmatprep.subr.mxu0 0.0
  %270 = vmatpush1.msra.mxu0 0.0
  %271 = vmatprep.subr.mxu0 0.0
  %272 = vmatpush1.msra.mxu0 0.0
  %273 = vmatprep.subr.mxu0 0.0
  %274 = vmatpush1.msra.mxu0 0.0
  %275 = vmatprep.subr.mxu0 0.0
  %276 = vmatpush1.msra.mxu0 0.0
  %277 = vmatprep.subr.mxu0 0.0
  %278 = vmatpush1.msra.mxu0 0.0
  %279 = vmatprep.subr.mxu0 0.0
  %280 = vmatpush1.msra.mxu0 0.0
  %281 = vmatprep.subr.mxu0 0.0
  %282 = vmatpush1.msra.mxu0 0.0
  %283 = vmatprep.subr.mxu0 0.0
  %284 = vmatpush1.msra.mxu0 0.0
  %285 = vmatprep.subr.mxu0 0.0
  %286 = vmatpush1.msra.mxu0 0.0
  %287 = vmatprep.subr.mxu0 0.0
  %288 = vmatpush1.msra.mxu0 0.0
  %289 = vmatprep.subr.mxu0 0.0
  %290 = vmatpush1.msra.mxu0 0.0
  %291 = vmatprep.subr.mxu0 0.0
  %292 = vmatpush1.msra.mxu0 0.0
  %293 = vmatprep.subr.mxu0 0.0
  %294 = vmatpush1.msra.mxu0 0.0
  %295 = vmatprep.subr.mxu0 0.0
  %296 = vmatpush1.msra.mxu0 0.0
  %297 = vmatprep.subr.mxu0 0.0
  %298 = vmatpush1.msra.mxu0 0.0
  %299 = vmatprep.subr.mxu0 0.0
  %300 = vmatpush1.msra.mxu0 0.0
  %301 = vmatprep.subr.mxu0 0.0
  %302 = vmatpush1.msra.mxu0 0.0
  %303 = vmatprep.subr.mxu0 0.0
  %304 = vmatpush1.msra.mxu0 0.0
  %305 = vmatprep.subr.mxu0 0.0
  %306 = vmatpush1.msra.mxu0 0.0
  %307 = vmatprep.mubr.f32.mxu0 0.0
  %308 = vmatmul.mubr.f32.gmra.mrb[0].mxu0 %v241
  %v309 = vpop.f32.mrb[0].mxu0
  %v310 = vadd.f32 0.0, %v309
  %v311 = vpop.f32.mrb[0].mxu0
  %312 = vdwg.mxu0
  %v314 = vrot.slane %v310, 6
  %v316 = vadd.f32 %v123, %v314
  %v317 = vmul.f32 %v316, %v140
  %v318 = vtanh.pop %v317
  %v319 = vmul.f32 %v318, %v140
  %v320 = vadd.f32 %v319, %v141
  %v322 = vrot.slane %v231, 6
  %v324 = vmul.f32 %v320, %v322
  %326 = vrot.lane.b32.xlu0 %v320, 64
  %v327 = vpop.permute.xlu0 %326
  %v329 = vmul.f32 %v320, %v327
  %331 = vrot.lane.b32.xlu0 %v329, 32
  %v332 = vpop.permute.xlu0 %331
  %v334 = vadd.f32 %v324, %v332
  %v335 = vtanh.pop %v334
  %337 = vrot.lane.b32.xlu0 %v335, 64
  %v338 = vpop.permute.xlu0 %337
  %v340 = vmul.f32 %v320, %v338
  %v342 = vrot.slane %v340, 2
  %343 = vrot.lane.b32.xlu0 %v342, 32
  %v344 = vpop.permute.xlu0 %343
  %v345 = vsel %vm142, %v344, 0
  %347 = vmatprep.subr.mxu0 0.0
  %348 = vmatpush1.msra.mxu0 %v131
  %349 = vmatprep.subr.mxu0 0.0
  %350 = vmatpush1.msra.mxu0 %v132
  %351 = vmatprep.subr.mxu0 0.0
  %352 = vmatpush1.msra.mxu0 %v133
  %353 = vmatprep.subr.mxu0 0.0
  %354 = vmatpush1.msra.mxu0 %v134
  %355 = vmatprep.subr.mxu0 0.0
  %356 = vmatpush1.msra.mxu0 0.0
  %357 = vmatprep.subr.mxu0 0.0
  %358 = vmatpush1.msra.mxu0 0.0
  %359 = vmatprep.subr.mxu0 0.0
  %360 = vmatpush1.msra.mxu0 0.0
  %361 = vmatprep.subr.mxu0 0.0
  %362 = vmatpush1.msra.mxu0 0.0
  %363 = vmatprep.subr.mxu0 0.0
  %364 = vmatpush1.msra.mxu0 0.0
  %365 = vmatprep.subr.mxu0 0.0
  %366 = vmatpush1.msra.mxu0 0.0
  %367 = vmatprep.subr.mxu0 0.0
  %368 = vmatpush1.msra.mxu0 0.0
  %369 = vmatprep.subr.mxu0 0.0
  %370 = vmatpush1.msra.mxu0 0.0
  %371 = vmatprep.subr.mxu0 0.0
  %372 = vmatpush1.msra.mxu0 0.0
  %373 = vmatprep.subr.mxu0 0.0
  %374 = vmatpush1.msra.mxu0 0.0
  %375 = vmatprep.subr.mxu0 0.0
  %376 = vmatpush1.msra.mxu0 0.0
  %377 = vmatprep.subr.mxu0 0.0
  %378 = vmatpush1.msra.mxu0 0.0
  %379 = vmatprep.subr.mxu0 0.0
  %380 = vmatpush1.msra.mxu0 0.0
  %381 = vmatprep.subr.mxu0 0.0
  %382 = vmatpush1.msra.mxu0 0.0
  %383 = vmatprep.subr.mxu0 0.0
  %384 = vmatpush1.msra.mxu0 0.0
  %385 = vmatprep.subr.mxu0 0.0
  %386 = vmatpush1.msra.mxu0 0.0
  %387 = vmatprep.subr.mxu0 0.0
  %388 = vmatpush1.msra.mxu0 0.0
  %389 = vmatprep.subr.mxu0 0.0
  %390 = vmatpush1.msra.mxu0 0.0
  %391 = vmatprep.subr.mxu0 0.0
  %392 = vmatpush1.msra.mxu0 0.0
  %393 = vmatprep.subr.mxu0 0.0
  %394 = vmatpush1.msra.mxu0 0.0
  %395 = vmatprep.subr.mxu0 0.0
  %396 = vmatpush1.msra.mxu0 0.0
  %397 = vmatprep.subr.mxu0 0.0
  %398 = vmatpush1.msra.mxu0 0.0
  %399 = vmatprep.subr.mxu0 0.0
  %400 = vmatpush1.msra.mxu0 0.0
  %401 = vmatprep.subr.mxu0 0.0
  %402 = vmatpush1.msra.mxu0 0.0
  %403 = vmatprep.subr.mxu0 0.0
  %404 = vmatpush1.msra.mxu0 0.0
  %405 = vmatprep.subr.mxu0 0.0
  %406 = vmatpush1.msra.mxu0 0.0
  %407 = vmatprep.subr.mxu0 0.0
  %408 = vmatpush1.msra.mxu0 0.0
  %409 = vmatprep.subr.mxu0 0.0
  %410 = vmatpush1.msra.mxu0 0.0
  %411 = vmatprep.mubr.f32.mxu0 0.0
  %412 = vmatmul.mubr.f32.gmra.mrb[0].mxu0 %v345
  %v413 = vpop.f32.mrb[0].mxu0
  %v414 = vadd.f32 0.0, %v413
  %v415 = vpop.f32.mrb[0].mxu0
  %416 = vdwg.mxu0
  %v418 = vrot.slane %v414, 4
  %v420 = vadd.f32 %v123, %v418
  %v421 = vmul.f32 %v420, %v140
  %v422 = vtanh.pop %v421
  %v423 = vmul.f32 %v422, %v140
  %v424 = vadd.f32 %v423, %v141
  %v426 = vrot.slane %v334, 6
  %v428 = vmul.f32 %v424, %v426
  %430 = vrot.lane.b32.xlu0 %v424, 64
  %v431 = vpop.permute.xlu0 %430
  %v433 = vmul.f32 %v424, %v431
  %435 = vrot.lane.b32.xlu0 %v433, 32
  %v436 = vpop.permute.xlu0 %435
  %v438 = vadd.f32 %v428, %v436
  %v439 = vtanh.pop %v438
  %441 = vrot.lane.b32.xlu0 %v439, 64
  %v442 = vpop.permute.xlu0 %441
  %v444 = vmul.f32 %v424, %v442
  %v446 = vrot.slane %v444, 4
  %447 = vrot.lane.b32.xlu0 %v446, 32
  %v448 = vpop.permute.xlu0 %447
  %v449 = vsel %vm142, %v448, 0
  %451 = vmatprep.subr.mxu0 0.0
  %452 = vmatpush1.msra.mxu0 %v131
  %453 = vmatprep.subr.mxu0 0.0
  %454 = vmatpush1.msra.mxu0 %v132
  %455 = vmatprep.subr.mxu0 0.0
  %456 = vmatpush1.msra.mxu0 %v133
  %457 = vmatprep.subr.mxu0 0.0
  %458 = vmatpush1.msra.mxu0 %v134
  %459 = vmatprep.subr.mxu0 0.0
  %460 = vmatpush1.msra.mxu0 0.0
  %461 = vmatprep.subr.mxu0 0.0
  %462 = vmatpush1.msra.mxu0 0.0
  %463 = vmatprep.subr.mxu0 0.0
  %464 = vmatpush1.msra.mxu0 0.0
  %465 = vmatprep.subr.mxu0 0.0
  %466 = vmatpush1.msra.mxu0 0.0
  %467 = vmatprep.subr.mxu0 0.0
  %468 = vmatpush1.msra.mxu0 0.0
  %469 = vmatprep.subr.mxu0 0.0
  %470 = vmatpush1.msra.mxu0 0.0
  %471 = vmatprep.subr.mxu0 0.0
  %472 = vmatpush1.msra.mxu0 0.0
  %473 = vmatprep.subr.mxu0 0.0
  %474 = vmatpush1.msra.mxu0 0.0
  %475 = vmatprep.subr.mxu0 0.0
  %476 = vmatpush1.msra.mxu0 0.0
  %477 = vmatprep.subr.mxu0 0.0
  %478 = vmatpush1.msra.mxu0 0.0
  %479 = vmatprep.subr.mxu0 0.0
  %480 = vmatpush1.msra.mxu0 0.0
  %481 = vmatprep.subr.mxu0 0.0
  %482 = vmatpush1.msra.mxu0 0.0
  %483 = vmatprep.subr.mxu0 0.0
  %484 = vmatpush1.msra.mxu0 0.0
  %485 = vmatprep.subr.mxu0 0.0
  %486 = vmatpush1.msra.mxu0 0.0
  %487 = vmatprep.subr.mxu0 0.0
  %488 = vmatpush1.msra.mxu0 0.0
  %489 = vmatprep.subr.mxu0 0.0
  %490 = vmatpush1.msra.mxu0 0.0
  %491 = vmatprep.subr.mxu0 0.0
  %492 = vmatpush1.msra.mxu0 0.0
  %493 = vmatprep.subr.mxu0 0.0
  %494 = vmatpush1.msra.mxu0 0.0
  %495 = vmatprep.subr.mxu0 0.0
  %496 = vmatpush1.msra.mxu0 0.0
  %497 = vmatprep.subr.mxu0 0.0
  %498 = vmatpush1.msra.mxu0 0.0
  %499 = vmatprep.subr.mxu0 0.0
  %500 = vmatpush1.msra.mxu0 0.0
  %501 = vmatprep.subr.mxu0 0.0
  %502 = vmatpush1.msra.mxu0 0.0
  %503 = vmatprep.subr.mxu0 0.0
  %504 = vmatpush1.msra.mxu0 0.0
  %505 = vmatprep.subr.mxu0 0.0
  %506 = vmatpush1.msra.mxu0 0.0
  %507 = vmatprep.subr.mxu0 0.0
  %508 = vmatpush1.msra.mxu0 0.0
  %509 = vmatprep.subr.mxu0 0.0
  %510 = vmatpush1.msra.mxu0 0.0
  %511 = vmatprep.subr.mxu0 0.0
  %512 = vmatpush1.msra.mxu0 0.0
  %513 = vmatprep.subr.mxu0 0.0
  %514 = vmatpush1.msra.mxu0 0.0
  %515 = vmatprep.mubr.f32.mxu0 0.0
  %516 = vmatmul.mubr.f32.gmra.mrb[0].mxu0 %v449
  %v517 = vpop.f32.mrb[0].mxu0
  %v518 = vadd.f32 0.0, %v517
  %v519 = vpop.f32.mrb[0].mxu0
  %520 = vdwg.mxu0
  %v522 = vrot.slane %v518, 2
  %v524 = vadd.f32 %v123, %v522
  %v525 = vmul.f32 %v524, %v140
  %v526 = vtanh.pop %v525
  %v527 = vmul.f32 %v526, %v140
  %v528 = vadd.f32 %v527, %v141
  %v530 = vrot.slane %v438, 6
  %v532 = vmul.f32 %v528, %v530
  %534 = vrot.lane.b32.xlu0 %v528, 64
  %v535 = vpop.permute.xlu0 %534
  %v537 = vmul.f32 %v528, %v535
  %539 = vrot.lane.b32.xlu0 %v537, 32
  %v540 = vpop.permute.xlu0 %539
  %v542 = vadd.f32 %v532, %v540
  %v543 = vtanh.pop %v542
  %545 = vrot.lane.b32.xlu0 %v543, 64
  %v546 = vpop.permute.xlu0 %545
  %v548 = vmul.f32 %v528, %v546
  %v550 = vrot.slane %v548, 6
  %551 = vrot.lane.b32.xlu0 %v550, 32
  %v552 = vpop.permute.xlu0 %551
  %v553 = vsel %vm142, %v552, 0
  %555 = vmatprep.subr.mxu0 0.0
  %556 = vmatpush1.msra.mxu0 %v131
  %557 = vmatprep.subr.mxu0 0.0
  %558 = vmatpush1.msra.mxu0 %v132
  %559 = vmatprep.subr.mxu0 0.0
  %560 = vmatpush1.msra.mxu0 %v133
  %561 = vmatprep.subr.mxu0 0.0
  %562 = vmatpush1.msra.mxu0 %v134
  %563 = vmatprep.subr.mxu0 0.0
  %564 = vmatpush1.msra.mxu0 0.0
  %565 = vmatprep.subr.mxu0 0.0
  %566 = vmatpush1.msra.mxu0 0.0
  %567 = vmatprep.subr.mxu0 0.0
  %568 = vmatpush1.msra.mxu0 0.0
  %569 = vmatprep.subr.mxu0 0.0
  %570 = vmatpush1.msra.mxu0 0.0
  %571 = vmatprep.subr.mxu0 0.0
  %572 = vmatpush1.msra.mxu0 0.0
  %573 = vmatprep.subr.mxu0 0.0
  %574 = vmatpush1.msra.mxu0 0.0
  %575 = vmatprep.subr.mxu0 0.0
  %576 = vmatpush1.msra.mxu0 0.0
  %577 = vmatprep.subr.mxu0 0.0
  %578 = vmatpush1.msra.mxu0 0.0
  %579 = vmatprep.subr.mxu0 0.0
  %580 = vmatpush1.msra.mxu0 0.0
  %581 = vmatprep.subr.mxu0 0.0
  %582 = vmatpush1.msra.mxu0 0.0
  %583 = vmatprep.subr.mxu0 0.0
  %584 = vmatpush1.msra.mxu0 0.0
  %585 = vmatprep.subr.mxu0 0.0
  %586 = vmatpush1.msra.mxu0 0.0
  %587 = vmatprep.subr.mxu0 0.0
  %588 = vmatpush1.msra.mxu0 0.0
  %589 = vmatprep.subr.mxu0 0.0
  %590 = vmatpush1.msra.mxu0 0.0
  %591 = vmatprep.subr.mxu0 0.0
  %592 = vmatpush1.msra.mxu0 0.0
  %593 = vmatprep.subr.mxu0 0.0
  %594 = vmatpush1.msra.mxu0 0.0
  %595 = vmatprep.subr.mxu0 0.0
  %596 = vmatpush1.msra.mxu0 0.0
  %597 = vmatprep.subr.mxu0 0.0
  %598 = vmatpush1.msra.mxu0 0.0
  %599 = vmatprep.subr.mxu0 0.0
  %600 = vmatpush1.msra.mxu0 0.0
  %601 = vmatprep.subr.mxu0 0.0
  %602 = vmatpush1.msra.mxu0 0.0
  %603 = vmatprep.subr.mxu0 0.0
  %604 = vmatpush1.msra.mxu0 0.0
  %605 = vmatprep.subr.mxu0 0.0
  %606 = vmatpush1.msra.mxu0 0.0
  %607 = vmatprep.subr.mxu0 0.0
  %608 = vmatpush1.msra.mxu0 0.0
  %609 = vmatprep.subr.mxu0 0.0
  %610 = vmatpush1.msra.mxu0 0.0
  %611 = vmatprep.subr.mxu0 0.0
  %612 = vmatpush1.msra.mxu0 0.0
  %613 = vmatprep.subr.mxu0 0.0
  %614 = vmatpush1.msra.mxu0 0.0
  %615 = vmatprep.subr.mxu0 0.0
  %616 = vmatpush1.msra.mxu0 0.0
  %617 = vmatprep.subr.mxu0 0.0
  %618 = vmatpush1.msra.mxu0 0.0
  %619 = vmatprep.mubr.f32.mxu0 0.0
  %620 = vmatmul.mubr.f32.gmra.mrb[0].mxu0 %v553
  %v621 = vpop.f32.mrb[0].mxu0
  %v622 = vadd.f32 0.0, %v621
  %v623 = vpop.f32.mrb[0].mxu0
  %624 = vdwg.mxu0
  %v625 = vadd.f32 %v128, %v622
  %v626 = vmul.f32 %v625, %v140
  %v627 = vtanh.pop %v626
  %v628 = vmul.f32 %v627, %v140
  %v629 = vadd.f32 %v628, %v141
  %v631 = vrot.slane %v542, 6
  %v633 = vmul.f32 %v629, %v631
  %635 = vrot.lane.b32.xlu0 %v629, 64
  %v636 = vpop.permute.xlu0 %635
  %v638 = vmul.f32 %v629, %v636
  %640 = vrot.lane.b32.xlu0 %v638, 32
  %v641 = vpop.permute.xlu0 %640
  %v643 = vadd.f32 %v633, %v641
  %v644 = vtanh.pop %v643
  %646 = vrot.lane.b32.xlu0 %v644, 64
  %v647 = vpop.permute.xlu0 %646
  %v649 = vmul.f32 %v629, %v647
  %651 = vrot.lane.b32.xlu0 %v649, 32
  %v652 = vpop.permute.xlu0 %651
  %vm654 = vcmask 254976
  %655 = vst.msk [vmem:[#allocation2] sm:$0x3] %vm654, %v652
  %v656 = vsel %vm142, %v652, 0
  %658 = vmatprep.subr.mxu0 0.0
  %659 = vmatpush1.msra.mxu0 %v131
  %660 = vmatprep.subr.mxu0 0.0
  %661 = vmatpush1.msra.mxu0 %v132
  %662 = vmatprep.subr.mxu0 0.0
  %663 = vmatpush1.msra.mxu0 %v133
  %664 = vmatprep.subr.mxu0 0.0
  %665 = vmatpush1.msra.mxu0 %v134
  %666 = vmatprep.subr.mxu0 0.0
  %667 = vmatpush1.msra.mxu0 0.0
  %668 = vmatprep.subr.mxu0 0.0
  %669 = vmatpush1.msra.mxu0 0.0
  %670 = vmatprep.subr.mxu0 0.0
  %671 = vmatpush1.msra.mxu0 0.0
  %672 = vmatprep.subr.mxu0 0.0
  %673 = vmatpush1.msra.mxu0 0.0
  %674 = vmatprep.subr.mxu0 0.0
  %675 = vmatpush1.msra.mxu0 0.0
  %676 = vmatprep.subr.mxu0 0.0
  %677 = vmatpush1.msra.mxu0 0.0
  %678 = vmatprep.subr.mxu0 0.0
  %679 = vmatpush1.msra.mxu0 0.0
  %680 = vmatprep.subr.mxu0 0.0
  %681 = vmatpush1.msra.mxu0 0.0
  %682 = vmatprep.subr.mxu0 0.0
  %683 = vmatpush1.msra.mxu0 0.0
  %684 = vmatprep.subr.mxu0 0.0
  %685 = vmatpush1.msra.mxu0 0.0
  %686 = vmatprep.subr.mxu0 0.0
  %687 = vmatpush1.msra.mxu0 0.0
  %688 = vmatprep.subr.mxu0 0.0
  %689 = vmatpush1.msra.mxu0 0.0
  %690 = vmatprep.subr.mxu0 0.0
  %691 = vmatpush1.msra.mxu0 0.0
  %692 = vmatprep.subr.mxu0 0.0
  %693 = vmatpush1.msra.mxu0 0.0
  %694 = vmatprep.subr.mxu0 0.0
  %695 = vmatpush1.msra.mxu0 0.0
  %696 = vmatprep.subr.mxu0 0.0
  %697 = vmatpush1.msra.mxu0 0.0
  %698 = vmatprep.subr.mxu0 0.0
  %699 = vmatpush1.msra.mxu0 0.0
  %700 = vmatprep.subr.mxu0 0.0
  %701 = vmatpush1.msra.mxu0 0.0
  %702 = vmatprep.subr.mxu0 0.0
  %703 = vmatpush1.msra.mxu0 0.0
  %704 = vmatprep.subr.mxu0 0.0
  %705 = vmatpush1.msra.mxu0 0.0
  %706 = vmatprep.subr.mxu0 0.0
  %707 = vmatpush1.msra.mxu0 0.0
  %708 = vmatprep.subr.mxu0 0.0
  %709 = vmatpush1.msra.mxu0 0.0
  %710 = vmatprep.subr.mxu0 0.0
  %711 = vmatpush1.msra.mxu0 0.0
  %712 = vmatprep.subr.mxu0 0.0
  %713 = vmatpush1.msra.mxu0 0.0
  %714 = vmatprep.subr.mxu0 0.0
  %715 = vmatpush1.msra.mxu0 0.0
  %716 = vmatprep.subr.mxu0 0.0
  %717 = vmatpush1.msra.mxu0 0.0
  %718 = vmatprep.subr.mxu0 0.0
  %719 = vmatpush1.msra.mxu0 0.0
  %720 = vmatprep.subr.mxu0 0.0
  %721 = vmatpush1.msra.mxu0 0.0
  %722 = vmatprep.mubr.f32.mxu0 0.0
  %723 = vmatmul.mubr.f32.gmra.mrb[0].mxu0 %v656
  %v724 = vpop.f32.mrb[0].mxu0
  %v725 = vadd.f32 0.0, %v724
  %v726 = vpop.f32.mrb[0].mxu0
  %727 = vdwg.mxu0
  %v729 = vrot.slane %v725, 6
  %v731 = vadd.f32 %v128, %v729
  %v732 = vmul.f32 %v731, %v140
  %v733 = vtanh.pop %v732
  %v734 = vmul.f32 %v733, %v140
  %v735 = vadd.f32 %v734, %v141
  %v737 = vrot.slane %v643, 6
  %v739 = vmul.f32 %v735, %v737
  %741 = vrot.lane.b32.xlu0 %v735, 64
  %v742 = vpop.permute.xlu0 %741
  %v744 = vmul.f32 %v735, %v742
  %746 = vrot.lane.b32.xlu0 %v744, 32
  %v747 = vpop.permute.xlu0 %746
  %v749 = vadd.f32 %v739, %v747
  %v750 = vtanh.pop %v749
  %752 = vrot.lane.b32.xlu0 %v750, 64
  %v753 = vpop.permute.xlu0 %752
  %v755 = vmul.f32 %v735, %v753
  %757 = vrot.lane.b32.xlu0 %v755, 32
  %v758 = vpop.permute.xlu0 %757
  %vm760 = vcmask 257026
  %761 = vst.msk [vmem:[#allocation2] sm:$0xc] %vm760, %v758
  %v762 = vrot.slane %v755, 2
  %763 = vrot.lane.b32.xlu0 %v762, 32
  %v764 = vpop.permute.xlu0 %763
  %v765 = vsel %vm142, %v764, 0
  %767 = vmatprep.subr.mxu0 0.0
  %768 = vmatpush1.msra.mxu0 %v131
  %769 = vmatprep.subr.mxu0 0.0
  %770 = vmatpush1.msra.mxu0 %v132
  %771 = vmatprep.subr.mxu0 0.0
  %772 = vmatpush1.msra.mxu0 %v133
  %773 = vmatprep.subr.mxu0 0.0
  %774 = vmatpush1.msra.mxu0 %v134
  %775 = vmatprep.subr.mxu0 0.0
  %776 = vmatpush1.msra.mxu0 0.0
  %777 = vmatprep.subr.mxu0 0.0
  %778 = vmatpush1.msra.mxu0 0.0
  %779 = vmatprep.subr.mxu0 0.0
  %780 = vmatpush1.msra.mxu0 0.0
  %781 = vmatprep.subr.mxu0 0.0
  %782 = vmatpush1.msra.mxu0 0.0
  %783 = vmatprep.subr.mxu0 0.0
  %784 = vmatpush1.msra.mxu0 0.0
  %785 = vmatprep.subr.mxu0 0.0
  %786 = vmatpush1.msra.mxu0 0.0
  %787 = vmatprep.subr.mxu0 0.0
  %788 = vmatpush1.msra.mxu0 0.0
  %789 = vmatprep.subr.mxu0 0.0
  %790 = vmatpush1.msra.mxu0 0.0
  %791 = vmatprep.subr.mxu0 0.0
  %792 = vmatpush1.msra.mxu0 0.0
  %793 = vmatprep.subr.mxu0 0.0
  %794 = vmatpush1.msra.mxu0 0.0
  %795 = vmatprep.subr.mxu0 0.0
  %796 = vmatpush1.msra.mxu0 0.0
  %797 = vmatprep.subr.mxu0 0.0
  %798 = vmatpush1.msra.mxu0 0.0
  %799 = vmatprep.subr.mxu0 0.0
  %800 = vmatpush1.msra.mxu0 0.0
  %801 = vmatprep.subr.mxu0 0.0
  %802 = vmatpush1.msra.mxu0 0.0
  %803 = vmatprep.subr.mxu0 0.0
  %804 = vmatpush1.msra.mxu0 0.0
  %805 = vmatprep.subr.mxu0 0.0
  %806 = vmatpush1.msra.mxu0 0.0
  %807 = vmatprep.subr.mxu0 0.0
  %808 = vmatpush1.msra.mxu0 0.0
  %809 = vmatprep.subr.mxu0 0.0
  %810 = vmatpush1.msra.mxu0 0.0
  %811 = vmatprep.subr.mxu0 0.0
  %812 = vmatpush1.msra.mxu0 0.0
  %813 = vmatprep.subr.mxu0 0.0
  %814 = vmatpush1.msra.mxu0 0.0
  %815 = vmatprep.subr.mxu0 0.0
  %816 = vmatpush1.msra.mxu0 0.0
  %817 = vmatprep.subr.mxu0 0.0
  %818 = vmatpush1.msra.mxu0 0.0
  %819 = vmatprep.subr.mxu0 0.0
  %820 = vmatpush1.msra.mxu0 0.0
  %821 = vmatprep.subr.mxu0 0.0
  %822 = vmatpush1.msra.mxu0 0.0
  %823 = vmatprep.subr.mxu0 0.0
  %824 = vmatpush1.msra.mxu0 0.0
  %825 = vmatprep.subr.mxu0 0.0
  %826 = vmatpush1.msra.mxu0 0.0
  %827 = vmatprep.subr.mxu0 0.0
  %828 = vmatpush1.msra.mxu0 0.0
  %829 = vmatprep.subr.mxu0 0.0
  %830 = vmatpush1.msra.mxu0 0.0
  %831 = vmatprep.mubr.f32.mxu0 0.0
  %832 = vmatmul.mubr.f32.gmra.mrb[0].mxu0 %v765
  %v833 = vpop.f32.mrb[0].mxu0
  %v834 = vadd.f32 0.0, %v833
  %v835 = vpop.f32.mrb[0].mxu0
  %836 = vdwg.mxu0
  %v838 = vrot.slane %v834, 4
  %v840 = vadd.f32 %v128, %v838
  %v841 = vmul.f32 %v840, %v140
  %v842 = vtanh.pop %v841
  %v843 = vmul.f32 %v842, %v140
  %v844 = vadd.f32 %v843, %v141
  %v846 = vrot.slane %v749, 6
  %v848 = vmul.f32 %v844, %v846
  %850 = vrot.lane.b32.xlu0 %v844, 64
  %v851 = vpop.permute.xlu0 %850
  %v853 = vmul.f32 %v844, %v851
  %855 = vrot.lane.b32.xlu0 %v853, 32
  %v856 = vpop.permute.xlu0 %855
  %v858 = vadd.f32 %v848, %v856
  %v859 = vtanh.pop %v858
  %861 = vrot.lane.b32.xlu0 %v859, 64
  %v862 = vpop.permute.xlu0 %861
  %v864 = vmul.f32 %v844, %v862
  %866 = vrot.lane.b32.xlu0 %v864, 32
  %v867 = vpop.permute.xlu0 %866
  %vm869 = vcmask 259076
  %870 = vst.msk [vmem:[#allocation2] sm:$0x30] %vm869, %v867
  %v871 = vrot.slane %v864, 4
  %872 = vrot.lane.b32.xlu0 %v871, 32
  %v873 = vpop.permute.xlu0 %872
  %v874 = vsel %vm142, %v873, 0
  %876 = vmatprep.subr.mxu0 0.0
  %877 = vmatpush1.msra.mxu0 %v131
  %878 = vmatprep.subr.mxu0 0.0
  %879 = vmatpush1.msra.mxu0 %v132
  %880 = vmatprep.subr.mxu0 0.0
  %881 = vmatpush1.msra.mxu0 %v133
  %882 = vmatprep.subr.mxu0 0.0
  %883 = vmatpush1.msra.mxu0 %v134
  %884 = vmatprep.subr.mxu0 0.0
  %885 = vmatpush1.msra.mxu0 0.0
  %886 = vmatprep.subr.mxu0 0.0
  %887 = vmatpush1.msra.mxu0 0.0
  %888 = vmatprep.subr.mxu0 0.0
  %889 = vmatpush1.msra.mxu0 0.0
  %890 = vmatprep.subr.mxu0 0.0
  %891 = vmatpush1.msra.mxu0 0.0
  %892 = vmatprep.subr.mxu0 0.0
  %893 = vmatpush1.msra.mxu0 0.0
  %894 = vmatprep.subr.mxu0 0.0
  %895 = vmatpush1.msra.mxu0 0.0
  %896 = vmatprep.subr.mxu0 0.0
  %897 = vmatpush1.msra.mxu0 0.0
  %898 = vmatprep.subr.mxu0 0.0
  %899 = vmatpush1.msra.mxu0 0.0
  %900 = vmatprep.subr.mxu0 0.0
  %901 = vmatpush1.msra.mxu0 0.0
  %902 = vmatprep.subr.mxu0 0.0
  %903 = vmatpush1.msra.mxu0 0.0
  %904 = vmatprep.subr.mxu0 0.0
  %905 = vmatpush1.msra.mxu0 0.0
  %906 = vmatprep.subr.mxu0 0.0
  %907 = vmatpush1.msra.mxu0 0.0
  %908 = vmatprep.subr.mxu0 0.0
  %909 = vmatpush1.msra.mxu0 0.0
  %910 = vmatprep.subr.mxu0 0.0
  %911 = vmatpush1.msra.mxu0 0.0
  %912 = vmatprep.subr.mxu0 0.0
  %913 = vmatpush1.msra.mxu0 0.0
  %914 = vmatprep.subr.mxu0 0.0
  %915 = vmatpush1.msra.mxu0 0.0
  %916 = vmatprep.subr.mxu0 0.0
  %917 = vmatpush1.msra.mxu0 0.0
  %918 = vmatprep.subr.mxu0 0.0
  %919 = vmatpush1.msra.mxu0 0.0
  %920 = vmatprep.subr.mxu0 0.0
  %921 = vmatpush1.msra.mxu0 0.0
  %922 = vmatprep.subr.mxu0 0.0
  %923 = vmatpush1.msra.mxu0 0.0
  %924 = vmatprep.subr.mxu0 0.0
  %925 = vmatpush1.msra.mxu0 0.0
  %926 = vmatprep.subr.mxu0 0.0
  %927 = vmatpush1.msra.mxu0 0.0
  %928 = vmatprep.subr.mxu0 0.0
  %929 = vmatpush1.msra.mxu0 0.0
  %930 = vmatprep.subr.mxu0 0.0
  %931 = vmatpush1.msra.mxu0 0.0
  %932 = vmatprep.subr.mxu0 0.0
  %933 = vmatpush1.msra.mxu0 0.0
  %934 = vmatprep.subr.mxu0 0.0
  %935 = vmatpush1.msra.mxu0 0.0
  %936 = vmatprep.subr.mxu0 0.0
  %937 = vmatpush1.msra.mxu0 0.0
  %938 = vmatprep.subr.mxu0 0.0
  %939 = vmatpush1.msra.mxu0 0.0
  %940 = vmatprep.mubr.f32.mxu0 0.0
  %941 = vmatmul.mubr.f32.gmra.mrb[0].mxu0 %v874
  %v942 = vpop.f32.mrb[0].mxu0
  %v943 = vadd.f32 0.0, %v942
  %v944 = vpop.f32.mrb[0].mxu0
  %945 = vdwg.mxu0
  %v947 = vrot.slane %v943, 2
  %v949 = vadd.f32 %v128, %v947
  %v950 = vmul.f32 %v949, %v140
  %v951 = vtanh.pop %v950
  %v952 = vmul.f32 %v951, %v140
  %v953 = vadd.f32 %v952, %v141
  %v955 = vrot.slane %v858, 6
  %v957 = vmul.f32 %v953, %v955
  %959 = vrot.lane.b32.xlu0 %v953, 64
  %v960 = vpop.permute.xlu0 %959
  %v962 = vmul.f32 %v953, %v960
  %964 = vrot.lane.b32.xlu0 %v962, 32
  %v965 = vpop.permute.xlu0 %964
  %v967 = vadd.f32 %v957, %v965
  %v968 = vtanh.pop %v967
  %970 = vrot.lane.b32.xlu0 %v968, 64
  %v971 = vpop.permute.xlu0 %970
  %v973 = vmul.f32 %v953, %v971
  %975 = vrot.lane.b32.xlu0 %v973, 32
  %v976 = vpop.permute.xlu0 %975
  %vm978 = vcmask 261126
  %979 = vst.msk [vmem:[#allocation2] sm:$0xc0] %vm978, %v976
  %v980 = vld [vmem:[#allocation2] sm:$0xff]
  %v981 = vld [vmem:[%s4] sm:$0xff]
  %v982 = vld [vmem:[%s4 + $0x8] sm:$0xff]
  %v983 = vld [vmem:[%s4 + $0x10] sm:$0xff]
  %v984 = vld [vmem:[%s4 + $0x18] sm:$0xff]
  %v985 = vld [vmem:[%s5] sm:$0x1]
  %v987 = vlaneseq
  %v988 = vshrl.u32 %v987, 7
  %v989 = vsub.s32 0, %v988
  %v990 = vrot.slane %v985, %v989
  %v993 = vsel %vm142, %v980, 0
  %995 = vmatprep.subr.mxu0 0.0
  %996 = vmatpush1.msra.mxu0 %v981
  %997 = vmatprep.subr.mxu0 0.0
  %998 = vmatpush1.msra.mxu0 %v982
  %999 = vmatprep.subr.mxu0 0.0
  %1000 = vmatpush1.msra.mxu0 %v983
  %1001 = vmatprep.subr.mxu0 0.0
  %1002 = vmatpush1.msra.mxu0 %v984
  %1003 = vmatprep.subr.mxu0 0.0
  %1004 = vmatpush1.msra.mxu0 0.0
  %1005 = vmatprep.subr.mxu0 0.0
  %1006 = vmatpush1.msra.mxu0 0.0
  %1007 = vmatprep.subr.mxu0 0.0
  %1008 = vmatpush1.msra.mxu0 0.0
  %1009 = vmatprep.subr.mxu0 0.0
  %1010 = vmatpush1.msra.mxu0 0.0
  %1011 = vmatprep.subr.mxu0 0.0
  %1012 = vmatpush1.msra.mxu0 0.0
  %1013 = vmatprep.subr.mxu0 0.0
  %1014 = vmatpush1.msra.mxu0 0.0
  %1015 = vmatprep.subr.mxu0 0.0
  %1016 = vmatpush1.msra.mxu0 0.0
  %1017 = vmatprep.subr.mxu0 0.0
  %1018 = vmatpush1.msra.mxu0 0.0
  %1019 = vmatprep.subr.mxu0 0.0
  %1020 = vmatpush1.msra.mxu0 0.0
  %1021 = vmatprep.subr.mxu0 0.0
  %1022 = vmatpush1.msra.mxu0 0.0
  %1023 = vmatprep.subr.mxu0 0.0
  %1024 = vmatpush1.msra.mxu0 0.0
  %1025 = vmatprep.subr.mxu0 0.0
  %1026 = vmatpush1.msra.mxu0 0.0
  %1027 = vmatprep.subr.mxu0 0.0
  %1028 = vmatpush1.msra.mxu0 0.0
  %1029 = vmatprep.subr.mxu0 0.0
  %1030 = vmatpush1.msra.mxu0 0.0
  %1031 = vmatprep.subr.mxu0 0.0
  %1032 = vmatpush1.msra.mxu0 0.0
  %1033 = vmatprep.subr.mxu0 0.0
  %1034 = vmatpush1.msra.mxu0 0.0
  %1035 = vmatprep.subr.mxu0 0.0
  %1036 = vmatpush1.msra.mxu0 0.0
  %1037 = vmatprep.subr.mxu0 0.0
  %1038 = vmatpush1.msra.mxu0 0.0
  %1039 = vmatprep.subr.mxu0 0.0
  %1040 = vmatpush1.msra.mxu0 0.0
  %1041 = vmatprep.subr.mxu0 0.0
  %1042 = vmatpush1.msra.mxu0 0.0
  %1043 = vmatprep.subr.mxu0 0.0
  %1044 = vmatpush1.msra.mxu0 0.0
  %1045 = vmatprep.subr.mxu0 0.0
  %1046 = vmatpush1.msra.mxu0 0.0
  %1047 = vmatprep.subr.mxu0 0.0
  %1048 = vmatpush1.msra.mxu0 0.0
  %1049 = vmatprep.subr.mxu0 0.0
  %1050 = vmatpush1.msra.mxu0 0.0
  %1051 = vmatprep.subr.mxu0 0.0
  %1052 = vmatpush1.msra.mxu0 0.0
  %1053 = vmatprep.subr.mxu0 0.0
  %1054 = vmatpush1.msra.mxu0 0.0
  %1055 = vmatprep.subr.mxu0 0.0
  %1056 = vmatpush1.msra.mxu0 0.0
  %1057 = vmatprep.subr.mxu0 0.0
  %1058 = vmatpush1.msra.mxu0 0.0
  %1059 = vmatprep.mubr.f32.mxu0 0.0
  %1060 = vmatmul.mubr.f32.gmra.mrb[0].mxu0 %v993
  %v1061 = vpop.f32.mrb[0].mxu0
  %v1062 = vadd.f32 %v990, %v1061
  %v1063 = vpop.f32.mrb[0].mxu0
  %1064 = vdwg.mxu0
  %v1065 = vmax.f32 %v1062, 0.0
  %v1066 = vld [vmem:[%s6] sm:$0xff]
  %v1067 = vld [vmem:[%s6 + $0x8] sm:$0xff]
  %v1068 = vld [vmem:[%s7] sm:$0x1]
  %v1070 = vlaneseq
  %v1071 = vshrl.u32 %v1070, 7
  %v1072 = vsub.s32 0, %v1071
  %v1073 = vrot.slane %v1068, %v1072
  %vm1075 = vcmask 130048
  %v1077 = vsel %vm1075, %v1065, 0
  %1079 = vmatprep.subr.mxu0 0.0
  %1080 = vmatpush1.msra.mxu0 %v1066
  %1081 = vmatprep.subr.mxu0 0.0
  %1082 = vmatpush1.msra.mxu0 %v1067
  %1083 = vmatprep.subr.mxu0 0.0
  %1084 = vmatpush1.msra.mxu0 0.0
  %1085 = vmatprep.subr.mxu0 0.0
  %1086 = vmatpush1.msra.mxu0 0.0
  %1087 = vmatprep.subr.mxu0 0.0
  %1088 = vmatpush1.msra.mxu0 0.0
  %1089 = vmatprep.subr.mxu0 0.0
  %1090 = vmatpush1.msra.mxu0 0.0
  %1091 = vmatprep.subr.mxu0 0.0
  %1092 = vmatpush1.msra.mxu0 0.0
  %1093 = vmatprep.subr.mxu0 0.0
  %1094 = vmatpush1.msra.mxu0 0.0
  %1095 = vmatprep.subr.mxu0 0.0
  %1096 = vmatpush1.msra.mxu0 0.0
  %1097 = vmatprep.subr.mxu0 0.0
  %1098 = vmatpush1.msra.mxu0 0.0
  %1099 = vmatprep.subr.mxu0 0.0
  %1100 = vmatpush1.msra.mxu0 0.0
  %1101 = vmatprep.subr.mxu0 0.0
  %1102 = vmatpush1.msra.mxu0 0.0
  %1103 = vmatprep.subr.mxu0 0.0
  %1104 = vmatpush1.msra.mxu0 0.0
  %1105 = vmatprep.subr.mxu0 0.0
  %1106 = vmatpush1.msra.mxu0 0.0
  %1107 = vmatprep.subr.mxu0 0.0
  %1108 = vmatpush1.msra.mxu0 0.0
  %1109 = vmatprep.subr.mxu0 0.0
  %1110 = vmatpush1.msra.mxu0 0.0
  %1111 = vmatprep.subr.mxu0 0.0
  %1112 = vmatpush1.msra.mxu0 0.0
  %1113 = vmatprep.subr.mxu0 0.0
  %1114 = vmatpush1.msra.mxu0 0.0
  %1115 = vmatprep.subr.mxu0 0.0
  %1116 = vmatpush1.msra.mxu0 0.0
  %1117 = vmatprep.subr.mxu0 0.0
  %1118 = vmatpush1.msra.mxu0 0.0
  %1119 = vmatprep.subr.mxu0 0.0
  %1120 = vmatpush1.msra.mxu0 0.0
  %1121 = vmatprep.subr.mxu0 0.0
  %1122 = vmatpush1.msra.mxu0 0.0
  %1123 = vmatprep.subr.mxu0 0.0
  %1124 = vmatpush1.msra.mxu0 0.0
  %1125 = vmatprep.subr.mxu0 0.0
  %1126 = vmatpush1.msra.mxu0 0.0
  %1127 = vmatprep.subr.mxu0 0.0
  %1128 = vmatpush1.msra.mxu0 0.0
  %1129 = vmatprep.subr.mxu0 0.0
  %1130 = vmatpush1.msra.mxu0 0.0
  %1131 = vmatprep.subr.mxu0 0.0
  %1132 = vmatpush1.msra.mxu0 0.0
  %1133 = vmatprep.subr.mxu0 0.0
  %1134 = vmatpush1.msra.mxu0 0.0
  %1135 = vmatprep.subr.mxu0 0.0
  %1136 = vmatpush1.msra.mxu0 0.0
  %1137 = vmatprep.subr.mxu0 0.0
  %1138 = vmatpush1.msra.mxu0 0.0
  %1139 = vmatprep.subr.mxu0 0.0
  %1140 = vmatpush1.msra.mxu0 0.0
  %1141 = vmatprep.subr.mxu0 0.0
  %1142 = vmatpush1.msra.mxu0 0.0
  %1143 = vmatprep.mubr.f32.mxu0 0.0
  %1144 = vmatmul.mubr.f32.gmra.mrb[0].mxu0 %v1077
  %v1145 = vpop.f32.mrb[0].mxu0
  %v1146 = vadd.f32 %v1073, %v1145
  %v1147 = vpop.f32.mrb[0].mxu0
  %1148 = vdwg.mxu0
  %v1149 = vmax.f32 %v1146, 0.0
  %v1150 = vld [vmem:[%s8] sm:$0xff]
  %v1151 = vld [vmem:[%s9] sm:$0x1]
  %v1153 = vlaneseq
  %v1154 = vshrl.u32 %v1153, 7
  %v1155 = vsub.s32 0, %v1154
  %v1156 = vrot.slane %v1151, %v1155
  %vm1158 = vcmask 64512
  %v1160 = vsel %vm1158, %v1149, 0
  %1162 = vmatprep.subr.mxu0 0.0
  %1163 = vmatpush1.msra.mxu0 %v1150
  %1164 = vmatprep.subr.mxu0 0.0
  %1165 = vmatpush1.msra.mxu0 0.0
  %1166 = vmatprep.subr.mxu0 0.0
  %1167 = vmatpush1.msra.mxu0 0.0
  %1168 = vmatprep.subr.mxu0 0.0
  %1169 = vmatpush1.msra.mxu0 0.0
  %1170 = vmatprep.subr.mxu0 0.0
  %1171 = vmatpush1.msra.mxu0 0.0
  %1172 = vmatprep.subr.mxu0 0.0
  %1173 = vmatpush1.msra.mxu0 0.0
  %1174 = vmatprep.subr.mxu0 0.0
  %1175 = vmatpush1.msra.mxu0 0.0
  %1176 = vmatprep.subr.mxu0 0.0
  %1177 = vmatpush1.msra.mxu0 0.0
  %1178 = vmatprep.subr.mxu0 0.0
  %1179 = vmatpush1.msra.mxu0 0.0
  %1180 = vmatprep.subr.mxu0 0.0
  %1181 = vmatpush1.msra.mxu0 0.0
  %1182 = vmatprep.subr.mxu0 0.0
  %1183 = vmatpush1.msra.mxu0 0.0
  %1184 = vmatprep.subr.mxu0 0.0
  %1185 = vmatpush1.msra.mxu0 0.0
  %1186 = vmatprep.subr.mxu0 0.0
  %1187 = vmatpush1.msra.mxu0 0.0
  %1188 = vmatprep.subr.mxu0 0.0
  %1189 = vmatpush1.msra.mxu0 0.0
  %1190 = vmatprep.subr.mxu0 0.0
  %1191 = vmatpush1.msra.mxu0 0.0
  %1192 = vmatprep.subr.mxu0 0.0
  %1193 = vmatpush1.msra.mxu0 0.0
  %1194 = vmatprep.subr.mxu0 0.0
  %1195 = vmatpush1.msra.mxu0 0.0
  %1196 = vmatprep.subr.mxu0 0.0
  %1197 = vmatpush1.msra.mxu0 0.0
  %1198 = vmatprep.subr.mxu0 0.0
  %1199 = vmatpush1.msra.mxu0 0.0
  %1200 = vmatprep.subr.mxu0 0.0
  %1201 = vmatpush1.msra.mxu0 0.0
  %1202 = vmatprep.subr.mxu0 0.0
  %1203 = vmatpush1.msra.mxu0 0.0
  %1204 = vmatprep.subr.mxu0 0.0
  %1205 = vmatpush1.msra.mxu0 0.0
  %1206 = vmatprep.subr.mxu0 0.0
  %1207 = vmatpush1.msra.mxu0 0.0
  %1208 = vmatprep.subr.mxu0 0.0
  %1209 = vmatpush1.msra.mxu0 0.0
  %1210 = vmatprep.subr.mxu0 0.0
  %1211 = vmatpush1.msra.mxu0 0.0
  %1212 = vmatprep.subr.mxu0 0.0
  %1213 = vmatpush1.msra.mxu0 0.0
  %1214 = vmatprep.subr.mxu0 0.0
  %1215 = vmatpush1.msra.mxu0 0.0
  %1216 = vmatprep.subr.mxu0 0.0
  %1217 = vmatpush1.msra.mxu0 0.0
  %1218 = vmatprep.subr.mxu0 0.0
  %1219 = vmatpush1.msra.mxu0 0.0
  %1220 = vmatprep.subr.mxu0 0.0
  %1221 = vmatpush1.msra.mxu0 0.0
  %1222 = vmatprep.subr.mxu0 0.0
  %1223 = vmatpush1.msra.mxu0 0.0
  %1224 = vmatprep.subr.mxu0 0.0
  %1225 = vmatpush1.msra.mxu0 0.0
  %1226 = vmatprep.mubr.f32.mxu0 0.0
  %1227 = vmatmul.mubr.f32.gmra.mrb[0].mxu0 %v1160
  %v1228 = vpop.f32.mrb[0].mxu0
  %v1229 = vadd.f32 %v1156, %v1228
  %v1230 = vpop.f32.mrb[0].mxu0
  %1231 = vdwg.mxu0
  %1232 = vst.msk [vmem:[%s10] sm:$0xff] %vm45, %v1229
  // Predicated region
  $region42: #{ltsf_lstm_forward.1} parent=0 // pred_check
    _
  $region43: #{ltsf_lstm_forward.1} parent=0 // pred_check_branch
    %1234 = sbr.rel (0) target = $region45
  $region44: #{ltsf_lstm_forward.1} parent=0 // pred_region
    _
  $region45: #{ltsf_lstm_forward.1} parent=0 // pred_fallthru
    _
  // Predicated region
  $region46: #{ltsf_lstm_forward.1} parent=0 // pred_check
    _
  $region47: #{ltsf_lstm_forward.1} parent=0 // pred_check_branch
    %1236 = sbr.rel (0) target = $region49
  $region48: #{ltsf_lstm_forward.1} parent=0 // pred_region
    _
  $region49: #{ltsf_lstm_forward.1} parent=0 // pred_fallthru
    _

</llo_original>
